<compile_context>
chip_gen: v5e
topology: v5e:2x2
jax: 0.10.0
libtpu: 0.0.40
codegen_flags: <defaults>
</compile_context>

<pallas_src>
import jax
import jax.numpy as jnp
from jax.experimental import pallas as pl
from jax.experimental.pallas import tpu as pltpu

CHANNELS = 1
IMG_SIZE = 28
IN_FEATURES = CHANNELS * IMG_SIZE * IMG_SIZE  # 784
H1 = 512
H2 = 256
OUT = 1
LEAKY_SLOPE = 0.2
TB_MAX = 2048                                 # max batch-tile rows per grid step


def _round_up(x, m):
    return (x + m - 1) // m * m


def _leaky_relu(x, slope):
    return jnp.where(x > 0, x, slope * x)


def discriminator_kernel(x_ref, w1_ref, b1_ref, w2_ref, b2_ref, w3_ref, b3_ref,
                         out_ref):
    """One batch tile: 2 bf16 MXU matmuls (f32 accum) + f32 VPU bias/LeakyReLU.

    x arrives as raw f32 and is cast to bf16 in-register right before the
    first matmul.  The 256->1 output layer is a VPU multiply + lane reduction
    so the N=1 matmul never touches the MXU.  b3 is a scalar read from SMEM.
    """
    x = x_ref[...].astype(jnp.bfloat16)                                # (TB, 784)

    h1 = jnp.dot(x, w1_ref[...], preferred_element_type=jnp.float32)   # (TB, 512) f32
    h1 = _leaky_relu(h1 + b1_ref[...], LEAKY_SLOPE)

    h2 = jnp.dot(h1.astype(jnp.bfloat16), w2_ref[...],
                 preferred_element_type=jnp.float32)                   # (TB, 256) f32
    h2 = _leaky_relu(h2 + b2_ref[...], LEAKY_SLOPE)

    # Final layer: out = h2 @ w3 + b3, with w3 as a broadcast row (1, 256).
    out = jnp.sum(h2 * w3_ref[...], axis=-1, keepdims=True) + b3_ref[0, 0]
    out_ref[...] = out.astype(out_ref.dtype)


@jax.jit
def discriminator_forward(x_img, w1, b1, w2, b2, w3, b3):
    """x_img: (B, C, H, W) NCHW image batch. Returns validity (B, 1) f32."""
    B = x_img.shape[0]
    # Free view: flatten to (B, 784).  No pad, no cast -> no extra HBM passes.
    x_flat = x_img.reshape(B, -1).astype(jnp.float32)

    # Batch tile: as large as possible (amortize per-step overhead), f32-native
    # 8-row granularity, and clamped so large batches get >= 2 grid steps
    # (v7x megacore shards the "parallel" axis across its 2 TensorCores).
    TB = min(TB_MAX, max(8, _round_up(pl.cdiv(B, 2), 8)))
    grid = (pl.cdiv(B, TB),)   # ragged last tile: OOB rows read garbage (rows
                               # are independent) and OOB output rows are dropped.

    # Param prep (tiny, one-time): bf16 MXU operands for the two big matmuls,
    # f32 rows for biases / final weight row, scalar b3 for SMEM.
    w1p = w1.astype(jnp.bfloat16)                  # (784, 512)
    w2p = w2.astype(jnp.bfloat16)                  # (512, 256)
    w3r = w3.astype(jnp.float32).reshape(1, H2)    # (256, 1) -> row (1, 256)
    b1r = b1.astype(jnp.float32).reshape(1, H1)
    b2r = b2.astype(jnp.float32).reshape(1, H1 // 2)
    b3r = b3.astype(jnp.float32).reshape(1, OUT)   # (1, 1) scalar, lives in SMEM

    out = pl.pallas_call(
        discriminator_kernel,
        out_shape=jax.ShapeDtypeStruct((B, OUT), jnp.float32),
        grid=grid,
        in_specs=[
            pl.BlockSpec((TB, IN_FEATURES), lambda i: (i, 0)),   # x: streamed per tile
            pl.BlockSpec((IN_FEATURES, H1), lambda i: (0, 0)),   # weights: resident
            pl.BlockSpec((1, H1), lambda i: (0, 0)),
            pl.BlockSpec((H1, H2), lambda i: (0, 0)),
            pl.BlockSpec((1, H2), lambda i: (0, 0)),
            pl.BlockSpec((1, H2), lambda i: (0, 0)),
            pl.BlockSpec(memory_space=pltpu.MemorySpace.SMEM),   # b3 scalar in SMEM
        ],
        out_specs=pl.BlockSpec((TB, OUT), lambda i: (i, 0)),
        compiler_params=pltpu.CompilerParams(
            dimension_semantics=("parallel",),
            # TB=2048 f32 x double-buffered (~12.8 MiB) + weights + f32
            # intermediates ~= 25 MiB: above v5e's 16 MiB default scoped VMEM,
            # comfortably below v7x's 64 MiB physical per-TC VMEM.
            vmem_limit_bytes=48 * 1024 * 1024,
        ),
    )(x_flat, w1p, b1r, w2p, b2r, w3r, b3r)

    return out


def init_params(key):
    """PyTorch-style Linear init: U(-1/sqrt(fan_in), 1/sqrt(fan_in)).

    Weights stored transposed vs. torch (in_features, out_features) so the
    kernel computes x @ W + b.
    """
    k1, k2, k3, k4, k5, k6 = jax.random.split(key, 6)

    def uniform(k, shape, fan_in):
        bound = 1.0 / jnp.sqrt(jnp.float32(fan_in))
        return jax.random.uniform(k, shape, jnp.float32, -bound, bound)

    w1 = uniform(k1, (IN_FEATURES, H1), IN_FEATURES)
    b1 = uniform(k2, (1, H1), IN_FEATURES)
    w2 = uniform(k3, (H1, H2), H1)
    b2 = uniform(k4, (1, H2), H1)
    w3 = uniform(k5, (H2, OUT), H2)
    b3 = uniform(k6, (1, OUT), H2)
    return w1, b1, w2, b2, w3, b3


def reference_forward(x_img, w1, b1, w2, b2, w3, b3):
    """Pure-JAX f32 reference for correctness checking."""
    x = x_img.reshape(x_img.shape[0], -1).astype(jnp.float32)
    h1 = x @ w1 + b1
    h1 = jnp.where(h1 > 0, h1, LEAKY_SLOPE * h1)
    h2 = h1 @ w2 + b2
    h2 = jnp.where(h2 > 0, h2, LEAKY_SLOPE * h2)
    return h2 @ w3 + b3


if __name__ == "__main__":
    key = jax.random.PRNGKey(0)
    k_params, k_x = jax.random.split(key)

    params = init_params(k_params)

    # Small batch of 28x28 single-channel "images", NCHW like PyTorch.
    B = 2
    x = jax.random.normal(k_x, (B, CHANNELS, IMG_SIZE, IMG_SIZE), jnp.float32)

    out = discriminator_forward(x, *params)
    out = jax.block_until_ready(out)
    assert out.shape == (B, 1), out.shape

    ref = reference_forward(x, *params)
    # bf16 MXU operands (f32 accumulation) -> loosened tolerance vs f32 ref.
    assert jnp.allclose(out, ref, atol=2e-2, rtol=2e-2), (out, ref)

    # Also exercise a batch that is not a multiple of the tile (ragged tail)
    # and large enough for >= 2 grid steps.
    B2 = 100
    x2 = jax.random.normal(k_x, (B2, CHANNELS, IMG_SIZE, IMG_SIZE), jnp.float32)
    out2 = jax.block_until_ready(discriminator_forward(x2, *params))
    ref2 = reference_forward(x2, *params)
    assert out2.shape == (B2, 1), out2.shape
    assert jnp.allclose(out2, ref2, atol=2e-2, rtol=2e-2)

    print("KERNEL_OK")
</pallas_src>

<mosaic_0001>
module attributes {stable_mosaic.version = 11 : i64} {
  func.func @discriminator_kernel(%arg0: i32, %arg1: memref<8x784xf32, #tpu.memory_space<vmem>>, %arg2: memref<784x512xbf16, #tpu.memory_space<vmem>>, %arg3: memref<1x512xf32, #tpu.memory_space<vmem>>, %arg4: memref<512x256xbf16, #tpu.memory_space<vmem>>, %arg5: memref<1x256xf32, #tpu.memory_space<vmem>>, %arg6: memref<1x256xf32, #tpu.memory_space<vmem>>, %arg7: memref<1x1xf32, #tpu.memory_space<smem>>, %arg8: memref<8x1xf32, #tpu.memory_space<vmem>>) attributes {dimension_semantics = [#tpu.dimension_semantics<parallel>], iteration_bounds = array<i64: 1>, scalar_prefetch = 0 : i64, scratch_operands = 0 : i64, tpu.core_type = #tpu.core_type<tc>, window_params = [{transform_indices = @transform_0, window_bounds = array<i64: 8, 784>}, {pipeline_mode = #tpu.pipeline_mode<synchronous>, transform_indices = @transform_1, window_bounds = array<i64: 784, 512>}, {pipeline_mode = #tpu.pipeline_mode<synchronous>, transform_indices = @transform_2, window_bounds = array<i64: 1, 512>}, {pipeline_mode = #tpu.pipeline_mode<synchronous>, transform_indices = @transform_3, window_bounds = array<i64: 512, 256>}, {pipeline_mode = #tpu.pipeline_mode<synchronous>, transform_indices = @transform_4, window_bounds = array<i64: 1, 256>}, {pipeline_mode = #tpu.pipeline_mode<synchronous>, transform_indices = @transform_5, window_bounds = array<i64: 1, 256>}, {transform_indices = @transform_6, window_bounds = array<i64: 1, 1>}, {transform_indices = @transform_7, window_bounds = array<i64: 8, 1>}]} {
    %c0 = arith.constant 0 : index
    %c0_0 = arith.constant 0 : index
    %0 = vector.load %arg1[%c0, %c0_0] : memref<8x784xf32, #tpu.memory_space<vmem>>, vector<8x784xf32>
    %1 = arith.truncf %0 : vector<8x784xf32> to vector<8x784xbf16>
    %c0_1 = arith.constant 0 : index
    %c0_2 = arith.constant 0 : index
    %2 = vector.load %arg2[%c0_1, %c0_2] : memref<784x512xbf16, #tpu.memory_space<vmem>>, vector<784x512xbf16>
    %cst = arith.constant dense<0.000000e+00> : vector<8x512xf32>
    %3 = tpu.matmul %1, %2, %cst {dimension_numbers = #tpu.dot_dimension_numbers<[1], [0], [0], [1], [0, 0, 1, 1], [], []>} : vector<8x784xbf16>, vector<784x512xbf16>, vector<8x512xf32> -> vector<8x512xf32>
    %c0_3 = arith.constant 0 : index
    %c0_4 = arith.constant 0 : index
    %4 = vector.load %arg3[%c0_3, %c0_4] : memref<1x512xf32, #tpu.memory_space<vmem>>, vector<1x512xf32>
    %5 = vector.broadcast %4 : vector<1x512xf32> to vector<8x512xf32>
    %6 = arith.addf %3, %5 : vector<8x512xf32>
    %cst_5 = arith.constant 0.000000e+00 : f32
    %7 = vector.broadcast %cst_5 : f32 to vector<8x512xf32>
    %8 = arith.cmpf ogt, %6, %7 : vector<8x512xf32>
    %cst_6 = arith.constant 2.000000e-01 : f32
    %9 = vector.broadcast %cst_6 : f32 to vector<8x512xf32>
    %10 = arith.mulf %9, %6 : vector<8x512xf32>
    %11 = arith.select %8, %6, %10 : vector<8x512xi1>, vector<8x512xf32>
    %12 = arith.truncf %11 : vector<8x512xf32> to vector<8x512xbf16>
    %c0_7 = arith.constant 0 : index
    %c0_8 = arith.constant 0 : index
    %13 = vector.load %arg4[%c0_7, %c0_8] : memref<512x256xbf16, #tpu.memory_space<vmem>>, vector<512x256xbf16>
    %cst_9 = arith.constant dense<0.000000e+00> : vector<8x256xf32>
    %14 = tpu.matmul %12, %13, %cst_9 {dimension_numbers = #tpu.dot_dimension_numbers<[1], [0], [0], [1], [0, 0, 1, 1], [], []>} : vector<8x512xbf16>, vector<512x256xbf16>, vector<8x256xf32> -> vector<8x256xf32>
    %c0_10 = arith.constant 0 : index
    %c0_11 = arith.constant 0 : index
    %15 = vector.load %arg5[%c0_10, %c0_11] : memref<1x256xf32, #tpu.memory_space<vmem>>, vector<1x256xf32>
    %16 = vector.broadcast %15 : vector<1x256xf32> to vector<8x256xf32>
    %17 = arith.addf %14, %16 : vector<8x256xf32>
    %cst_12 = arith.constant 0.000000e+00 : f32
    %18 = vector.broadcast %cst_12 : f32 to vector<8x256xf32>
    %19 = arith.cmpf ogt, %17, %18 : vector<8x256xf32>
    %cst_13 = arith.constant 2.000000e-01 : f32
    %20 = vector.broadcast %cst_13 : f32 to vector<8x256xf32>
    %21 = arith.mulf %20, %17 : vector<8x256xf32>
    %22 = arith.select %19, %17, %21 : vector<8x256xi1>, vector<8x256xf32>
    %c0_14 = arith.constant 0 : index
    %c0_15 = arith.constant 0 : index
    %23 = vector.load %arg6[%c0_14, %c0_15] : memref<1x256xf32, #tpu.memory_space<vmem>>, vector<1x256xf32>
    %24 = vector.broadcast %23 : vector<1x256xf32> to vector<8x256xf32>
    %25 = arith.mulf %22, %24 : vector<8x256xf32>
    %cst_16 = arith.constant dense<0.000000e+00> : vector<8xf32>
    %26 = vector.multi_reduction <add>, %25, %cst_16 [1] : vector<8x256xf32> to vector<8xf32>
    %27 = vector.shape_cast %26 : vector<8xf32> to vector<8x1xf32>
    %c0_17 = arith.constant 0 : index
    %c0_18 = arith.constant 0 : index
    %28 = memref.load %arg7[%c0_17, %c0_18] : memref<1x1xf32, #tpu.memory_space<smem>>
    %29 = vector.broadcast %28 : f32 to vector<8x1xf32>
    %30 = arith.addf %27, %29 : vector<8x1xf32>
    %c0_19 = arith.constant 0 : index
    %c0_20 = arith.constant 0 : index
    %31 = vector.load %arg8[%c0_19, %c0_20] : memref<8x1xf32, #tpu.memory_space<vmem>>, vector<8x1xf32>
    tpu.vector_store %arg8[%c0_19, %c0_20], %30 {strides = array<i32>} : memref<8x1xf32, #tpu.memory_space<vmem>>, vector<8x1xf32>,
    return
  }
  func.func @transform_0(%arg0: i32) -> (i32, i32) {
    %c0_i32 = arith.constant 0 : i32
    %c0_i32_0 = arith.constant 0 : i32
    return %arg0, %c0_i32 : i32, i32
  }
  func.func @transform_1(%arg0: i32) -> (i32, i32) {
    %c0_i32 = arith.constant 0 : i32
    %c0_i32_0 = arith.constant 0 : i32
    %c0_i32_1 = arith.constant 0 : i32
    return %c0_i32, %c0_i32_0 : i32, i32
  }
  func.func @transform_2(%arg0: i32) -> (i32, i32) {
    %c0_i32 = arith.constant 0 : i32
    %c0_i32_0 = arith.constant 0 : i32
    %c0_i32_1 = arith.constant 0 : i32
    return %c0_i32, %c0_i32_0 : i32, i32
  }
  func.func @transform_3(%arg0: i32) -> (i32, i32) {
    %c0_i32 = arith.constant 0 : i32
    %c0_i32_0 = arith.constant 0 : i32
    %c0_i32_1 = arith.constant 0 : i32
    return %c0_i32, %c0_i32_0 : i32, i32
  }
  func.func @transform_4(%arg0: i32) -> (i32, i32) {
    %c0_i32 = arith.constant 0 : i32
    %c0_i32_0 = arith.constant 0 : i32
    %c0_i32_1 = arith.constant 0 : i32
    return %c0_i32, %c0_i32_0 : i32, i32
  }
  func.func @transform_5(%arg0: i32) -> (i32, i32) {
    %c0_i32 = arith.constant 0 : i32
    %c0_i32_0 = arith.constant 0 : i32
    %c0_i32_1 = arith.constant 0 : i32
    return %c0_i32, %c0_i32_0 : i32, i32
  }
  func.func @transform_6(%arg0: i32) -> (i32, i32) {
    %c0_i32 = arith.constant 0 : i32
    %c0_i32_0 = arith.constant 0 : i32
    %c0_i32_1 = arith.constant 0 : i32
    return %c0_i32, %c0_i32_0 : i32, i32
  }
  func.func @transform_7(%arg0: i32) -> (i32, i32) {
    %c0_i32 = arith.constant 0 : i32
    %c0_i32_0 = arith.constant 0 : i32
    return %arg0, %c0_i32 : i32, i32
  }
}

</mosaic_0001>

<llo_original>
// kernel: discriminator_forward.1
$region0: #{discriminator_forward.1}
  #allocation0 [shape = 'u32[]', space=smem, size = 0x4, offset = 0x4, fixed_abs, tag = 'smem constant byte address 0x4 - core index']
  #allocation1 [shape = 'u32[72,128]{1,0:T(1,128)}', space=vmem, size = 0x9000, scoped, tag = 'internal scratch']
  #allocation2 [shape = 'f32[1,1]{1,0:T(1,128)S(6)}', space=smem, size = 0x200, scoped, tag = 'scoped memory for discriminator_forward.1']
  %s0 = inlined_call_operand.vmem [shape: f32[2,784], index: 0, kind: input, shape index: {}]
  %s1 = inlined_call_operand.vmem [shape: bf16[784,512], index: 1, kind: input, shape index: {}]
  %s2 = inlined_call_operand.vmem [shape: f32[1,512], index: 2, kind: input, shape index: {}]
  %s3 = inlined_call_operand.vmem [shape: bf16[512,256], index: 3, kind: input, shape index: {}]
  %s4 = inlined_call_operand.vmem [shape: f32[1,256], index: 4, kind: input, shape index: {}]
  %s5 = inlined_call_operand.vmem [shape: f32[1,256], index: 5, kind: input, shape index: {}]
  %s6 = inlined_call_operand.<no memory space> [shape: f32[1,1], index: 6, kind: input, shape index: {}]
  %s7 = inlined_call_operand.vmem [shape: f32[2,1], index: 7, kind: output, shape index: {}]
  %s8 = sld [smem:[#allocation0]]
  $region68: #{discriminator_forward.1} parent=0
    _
  %s10 = ssub.s32 1, %s8
  %s11 = scalar_select 0, %s10, %s8
  %12 = sst [smem:[#allocation2]] %s6
  $region1: #{discriminator_forward.1} parent=0
    #allocation3 [shape = 'u8[4096]{0}', space=vmem, size = 0x1000, scoped, tag = 'output window, operand 0, single buffered']
    // Predicated region
    $region2: #{discriminator_forward.1} parent=1 // pred_check
      _
    $region3: #{discriminator_forward.1} parent=1 // pred_check_branch
      %14 = sbr.rel (0) target = $region5
    $region4: #{discriminator_forward.1} parent=1 // pred_region
      _
    $region5: #{discriminator_forward.1} parent=1 // pred_fallthru
      _
    // Predicated region
    $region6: #{discriminator_forward.1} parent=1 // pred_check
      _
    $region7: #{discriminator_forward.1} parent=1 // pred_check_branch
      %16 = sbr.rel (0) target = $region9
    $region8: #{discriminator_forward.1} parent=1 // pred_region
      _
    $region9: #{discriminator_forward.1} parent=1 // pred_fallthru
      _
    // Predicated region
    $region10: #{discriminator_forward.1} parent=1 // pred_check
      _
    $region11: #{discriminator_forward.1} parent=1 // pred_check_branch
      %18 = sbr.rel (0) target = $region13
    $region12: #{discriminator_forward.1} parent=1 // pred_region
      _
    $region13: #{discriminator_forward.1} parent=1 // pred_fallthru
      _
    // Predicated region
    $region14: #{discriminator_forward.1} parent=1 // pred_check
      _
    $region15: #{discriminator_forward.1} parent=1 // pred_check_branch
      %20 = sbr.rel (0) target = $region17
    $region16: #{discriminator_forward.1} parent=1 // pred_region
      _
    $region17: #{discriminator_forward.1} parent=1 // pred_fallthru
      _
    // Predicated region
    $region18: #{discriminator_forward.1} parent=1 // pred_check
      _
    $region19: #{discriminator_forward.1} parent=1 // pred_check_branch
      %22 = sbr.rel (0) target = $region21
    $region20: #{discriminator_forward.1} parent=1 // pred_region
      _
    $region21: #{discriminator_forward.1} parent=1 // pred_fallthru
      _
    // Predicated region
    $region22: #{discriminator_forward.1} parent=1 // pred_check
      _
    $region23: #{discriminator_forward.1} parent=1 // pred_check_branch
      %24 = sbr.rel (0) target = $region25
    $region24: #{discriminator_forward.1} parent=1 // pred_region
      _
    $region25: #{discriminator_forward.1} parent=1 // pred_fallthru
      _
    // Predicated region
    $region26: #{discriminator_forward.1} parent=1 // pred_check
      _
    $region27: #{discriminator_forward.1} parent=1 // pred_check_branch
      %26 = sbr.rel (0) target = $region29
    $region28: #{discriminator_forward.1} parent=1 // pred_region
      _
    $region29: #{discriminator_forward.1} parent=1 // pred_fallthru
      _
    %v28 = vld [vmem:[%s0] sm:$0xff]
    %v29 = vld [vmem:[%s0 + $0x8] sm:$0x3f]
    %v30 = vld [vmem:[%s0 + $0xe] sm:$0xff]
    %v31 = vld [vmem:[%s0 + $0x16] sm:$0x3f]
    %v32 = vld [vmem:[%s0 + $0x1c] sm:$0xff]
    %v33 = vld [vmem:[%s0 + $0x24] sm:$0x3f]
    %v34 = vld [vmem:[%s0 + $0x2a] sm:$0xff]
    %v35 = vld [vmem:[%s0 + $0x32] sm:$0x3f]
    %44 = vst [vmem:[#allocation1] ss:$4 sm:$0xff] %v28
    %s45 = scalar_lea.vmem [#allocation1], 1
    %46 = vst [vmem:[%s45] ss:$4 sm:$0xff] %v30
    %s47 = scalar_lea.vmem [#allocation1], 2
    %48 = vst [vmem:[%s47] ss:$4 sm:$0xff] %v32
    %s49 = scalar_lea.vmem [#allocation1], 3
    %50 = vst [vmem:[%s49] ss:$4 sm:$0xff] %v34
    %s51 = scalar_lea.vmem [#allocation1], 32
    %52 = vst [vmem:[%s51] ss:$4 sm:$0xff] %v29
    %s53 = scalar_lea.vmem [#allocation1], 33
    %54 = vst [vmem:[%s53] ss:$4 sm:$0xff] %v31
    %s55 = scalar_lea.vmem [#allocation1], 34
    %56 = vst [vmem:[%s55] ss:$4 sm:$0xff] %v33
    %s57 = scalar_lea.vmem [#allocation1], 35
    %58 = vst [vmem:[%s57] ss:$4 sm:$0xff] %v35
    %v59 = vld.sshfl [vmem:[#allocation1] sm:$0xff pattern:$0x73625140]
    %v60 = vld.sshfl [vmem:[#allocation1 + $0x8] sm:$0xff pattern:$0x73625140]
    %v61 = vld.sshfl [vmem:[#allocation1 + $0x10] sm:$0xff pattern:$0x73625140]
    %v62 = vld.sshfl [vmem:[#allocation1 + $0x18] sm:$0xff pattern:$0x73625140]
    %v63 = vld.sshfl [vmem:[#allocation1 + $0x20] sm:$0xff pattern:$0x73625140]
    %v64 = vld.sshfl [vmem:[#allocation1 + $0x28] sm:$0xff pattern:$0x73625140]
    %v65 = vld.sshfl [vmem:[#allocation1 + $0x30] sm:$0xff pattern:$0x73625140]
    %v73 = vpack.c.bf16 %v59, %v59
    %v74 = vpack.c.bf16 %v60, %v60
    %v75 = vpack.c.bf16 %v61, %v61
    %v76 = vpack.c.bf16 %v62, %v62
    %v77 = vpack.c.bf16 %v63, %v63
    %v78 = vpack.c.bf16 %v64, %v64
    %v79 = vpack.c.bf16 %v65, %v65
    %v80 = vld [vmem:[%s1] sm:$0xff]
    %v81 = vld [vmem:[%s1 + $0x8] sm:$0xff]
    %v82 = vld [vmem:[%s1 + $0x10] sm:$0xff]
    %v83 = vld [vmem:[%s1 + $0x18] sm:$0xff]
    %v84 = vld [vmem:[%s1 + $0x20] sm:$0xff]
    %v85 = vld [vmem:[%s1 + $0x28] sm:$0xff]
    %v86 = vld [vmem:[%s1 + $0x30] sm:$0xff]
    %v87 = vld [vmem:[%s1 + $0x38] sm:$0xff]
    %v88 = vld [vmem:[%s1 + $0x40] sm:$0xff]
    %v89 = vld [vmem:[%s1 + $0x48] sm:$0xff]
    %v90 = vld [vmem:[%s1 + $0x50] sm:$0xff]
    %v91 = vld [vmem:[%s1 + $0x58] sm:$0xff]
    %v92 = vld [vmem:[%s1 + $0x60] sm:$0xff]
    %v93 = vld [vmem:[%s1 + $0x68] sm:$0xff]
    %v94 = vld [vmem:[%s1 + $0x70] sm:$0xff]
    %v95 = vld [vmem:[%s1 + $0x78] sm:$0xff]
    %v96 = vld [vmem:[%s1 + $0x80] sm:$0xff]
    %v97 = vld [vmem:[%s1 + $0x88] sm:$0xff]
    %v98 = vld [vmem:[%s1 + $0x90] sm:$0xff]
    %v99 = vld [vmem:[%s1 + $0x98] sm:$0xff]
    %v100 = vld [vmem:[%s1 + $0xa0] sm:$0xff]
    %v101 = vld [vmem:[%s1 + $0xa8] sm:$0xff]
    %v102 = vld [vmem:[%s1 + $0xb0] sm:$0xff]
    %v103 = vld [vmem:[%s1 + $0xb8] sm:$0xff]
    %v104 = vld [vmem:[%s1 + $0xc0] sm:$0xff]
    %v105 = vld [vmem:[%s1 + $0xc8] sm:$0xff]
    %v106 = vld [vmem:[%s1 + $0xd0] sm:$0xff]
    %v107 = vld [vmem:[%s1 + $0xd8] sm:$0xff]
    %v108 = vld [vmem:[%s1 + $0xe0] sm:$0xff]
    %v109 = vld [vmem:[%s1 + $0xe8] sm:$0xff]
    %v110 = vld [vmem:[%s1 + $0xf0] sm:$0xff]
    %v111 = vld [vmem:[%s1 + $0xf8] sm:$0xff]
    %v112 = vld [vmem:[%s1 + $0x100] sm:$0xff]
    %v113 = vld [vmem:[%s1 + $0x108] sm:$0xff]
    %v114 = vld [vmem:[%s1 + $0x110] sm:$0xff]
    %v115 = vld [vmem:[%s1 + $0x118] sm:$0xff]
    %v116 = vld [vmem:[%s1 + $0x120] sm:$0xff]
    %v117 = vld [vmem:[%s1 + $0x128] sm:$0xff]
    %v118 = vld [vmem:[%s1 + $0x130] sm:$0xff]
    %v119 = vld [vmem:[%s1 + $0x138] sm:$0xff]
    %v120 = vld [vmem:[%s1 + $0x140] sm:$0xff]
    %v121 = vld [vmem:[%s1 + $0x148] sm:$0xff]
    %v122 = vld [vmem:[%s1 + $0x150] sm:$0xff]
    %v123 = vld [vmem:[%s1 + $0x158] sm:$0xff]
    %v124 = vld [vmem:[%s1 + $0x160] sm:$0xff]
    %v125 = vld [vmem:[%s1 + $0x168] sm:$0xff]
    %v126 = vld [vmem:[%s1 + $0x170] sm:$0xff]
    %v127 = vld [vmem:[%s1 + $0x178] sm:$0xff]
    %v128 = vld [vmem:[%s1 + $0x180] sm:$0xff]
    %v129 = vld [vmem:[%s1 + $0x188] sm:$0xff]
    %v130 = vld [vmem:[%s1 + $0x190] sm:$0xff]
    %v131 = vld [vmem:[%s1 + $0x198] sm:$0xff]
    %v132 = vld [vmem:[%s1 + $0x1a0] sm:$0xff]
    %v133 = vld [vmem:[%s1 + $0x1a8] sm:$0xff]
    %v134 = vld [vmem:[%s1 + $0x1b0] sm:$0xff]
    %v135 = vld [vmem:[%s1 + $0x1b8] sm:$0xff]
    %v136 = vld [vmem:[%s1 + $0x1c0] sm:$0xff]
    %v137 = vld [vmem:[%s1 + $0x1c8] sm:$0xff]
    %v138 = vld [vmem:[%s1 + $0x1d0] sm:$0xff]
    %v139 = vld [vmem:[%s1 + $0x1d8] sm:$0xff]
    %v140 = vld [vmem:[%s1 + $0x1e0] sm:$0xff]
    %v141 = vld [vmem:[%s1 + $0x1e8] sm:$0xff]
    %v142 = vld [vmem:[%s1 + $0x1f0] sm:$0xff]
    %v143 = vld [vmem:[%s1 + $0x1f8] sm:$0xff]
    %v144 = vld [vmem:[%s1 + $0x200] sm:$0xff]
    %v145 = vld [vmem:[%s1 + $0x208] sm:$0xff]
    %v146 = vld [vmem:[%s1 + $0x210] sm:$0xff]
    %v147 = vld [vmem:[%s1 + $0x218] sm:$0xff]
    %v148 = vld [vmem:[%s1 + $0x220] sm:$0xff]
    %v149 = vld [vmem:[%s1 + $0x228] sm:$0xff]
    %v150 = vld [vmem:[%s1 + $0x230] sm:$0xff]
    %v151 = vld [vmem:[%s1 + $0x238] sm:$0xff]
    %v152 = vld [vmem:[%s1 + $0x240] sm:$0xff]
    %v153 = vld [vmem:[%s1 + $0x248] sm:$0xff]
    %v154 = vld [vmem:[%s1 + $0x250] sm:$0xff]
    %v155 = vld [vmem:[%s1 + $0x258] sm:$0xff]
    %v156 = vld [vmem:[%s1 + $0x260] sm:$0xff]
    %v157 = vld [vmem:[%s1 + $0x268] sm:$0xff]
    %v158 = vld [vmem:[%s1 + $0x270] sm:$0xff]
    %v159 = vld [vmem:[%s1 + $0x278] sm:$0xff]
    %v160 = vld [vmem:[%s1 + $0x280] sm:$0xff]
    %v161 = vld [vmem:[%s1 + $0x288] sm:$0xff]
    %v162 = vld [vmem:[%s1 + $0x290] sm:$0xff]
    %v163 = vld [vmem:[%s1 + $0x298] sm:$0xff]
    %v164 = vld [vmem:[%s1 + $0x2a0] sm:$0xff]
    %v165 = vld [vmem:[%s1 + $0x2a8] sm:$0xff]
    %v166 = vld [vmem:[%s1 + $0x2b0] sm:$0xff]
    %v167 = vld [vmem:[%s1 + $0x2b8] sm:$0xff]
    %v168 = vld [vmem:[%s1 + $0x2c0] sm:$0xff]
    %v169 = vld [vmem:[%s1 + $0x2c8] sm:$0xff]
    %v170 = vld [vmem:[%s1 + $0x2d0] sm:$0xff]
    %v171 = vld [vmem:[%s1 + $0x2d8] sm:$0xff]
    %v172 = vld [vmem:[%s1 + $0x2e0] sm:$0xff]
    %v173 = vld [vmem:[%s1 + $0x2e8] sm:$0xff]
    %v174 = vld [vmem:[%s1 + $0x2f0] sm:$0xff]
    %v175 = vld [vmem:[%s1 + $0x2f8] sm:$0xff]
    %v176 = vld [vmem:[%s1 + $0x300] sm:$0xff]
    %v177 = vld [vmem:[%s1 + $0x308] sm:$0xff]
    %v178 = vld [vmem:[%s1 + $0x310] sm:$0xff]
    %v179 = vld [vmem:[%s1 + $0x318] sm:$0xff]
    %v180 = vld [vmem:[%s1 + $0x320] sm:$0xff]
    %v181 = vld [vmem:[%s1 + $0x328] sm:$0xff]
    %v182 = vld [vmem:[%s1 + $0x330] sm:$0xff]
    %v183 = vld [vmem:[%s1 + $0x338] sm:$0xff]
    %v184 = vld [vmem:[%s1 + $0x340] sm:$0xff]
    %v185 = vld [vmem:[%s1 + $0x348] sm:$0xff]
    %v186 = vld [vmem:[%s1 + $0x350] sm:$0xff]
    %v187 = vld [vmem:[%s1 + $0x358] sm:$0xff]
    %v188 = vld [vmem:[%s1 + $0x360] sm:$0xff]
    %v189 = vld [vmem:[%s1 + $0x368] sm:$0xff]
    %v190 = vld [vmem:[%s1 + $0x370] sm:$0xff]
    %v191 = vld [vmem:[%s1 + $0x378] sm:$0xff]
    %v192 = vld [vmem:[%s1 + $0x380] sm:$0xff]
    %v193 = vld [vmem:[%s1 + $0x388] sm:$0xff]
    %v194 = vld [vmem:[%s1 + $0x390] sm:$0xff]
    %v195 = vld [vmem:[%s1 + $0x398] sm:$0xff]
    %v196 = vld [vmem:[%s1 + $0x3a0] sm:$0xff]
    %v197 = vld [vmem:[%s1 + $0x3a8] sm:$0xff]
    %v198 = vld [vmem:[%s1 + $0x3b0] sm:$0xff]
    %v199 = vld [vmem:[%s1 + $0x3b8] sm:$0xff]
    %v200 = vld [vmem:[%s1 + $0x3c0] sm:$0xff]
    %v201 = vld [vmem:[%s1 + $0x3c8] sm:$0xff]
    %v202 = vld [vmem:[%s1 + $0x3d0] sm:$0xff]
    %v203 = vld [vmem:[%s1 + $0x3d8] sm:$0xff]
    %v204 = vld [vmem:[%s1 + $0x3e0] sm:$0xff]
    %v205 = vld [vmem:[%s1 + $0x3e8] sm:$0xff]
    %v206 = vld [vmem:[%s1 + $0x3f0] sm:$0xff]
    %v207 = vld [vmem:[%s1 + $0x3f8] sm:$0xff]
    %v208 = vld [vmem:[%s1 + $0x400] sm:$0xff]
    %v209 = vld [vmem:[%s1 + $0x408] sm:$0xff]
    %v210 = vld [vmem:[%s1 + $0x410] sm:$0xff]
    %v211 = vld [vmem:[%s1 + $0x418] sm:$0xff]
    %v212 = vld [vmem:[%s1 + $0x420] sm:$0xff]
    %v213 = vld [vmem:[%s1 + $0x428] sm:$0xff]
    %v214 = vld [vmem:[%s1 + $0x430] sm:$0xff]
    %v215 = vld [vmem:[%s1 + $0x438] sm:$0xff]
    %v216 = vld [vmem:[%s1 + $0x440] sm:$0xff]
    %v217 = vld [vmem:[%s1 + $0x448] sm:$0xff]
    %v218 = vld [vmem:[%s1 + $0x450] sm:$0xff]
    %v219 = vld [vmem:[%s1 + $0x458] sm:$0xff]
    %v220 = vld [vmem:[%s1 + $0x460] sm:$0xff]
    %v221 = vld [vmem:[%s1 + $0x468] sm:$0xff]
    %v222 = vld [vmem:[%s1 + $0x470] sm:$0xff]
    %v223 = vld [vmem:[%s1 + $0x478] sm:$0xff]
    %v224 = vld [vmem:[%s1 + $0x480] sm:$0xff]
    %v225 = vld [vmem:[%s1 + $0x488] sm:$0xff]
    %v226 = vld [vmem:[%s1 + $0x490] sm:$0xff]
    %v227 = vld [vmem:[%s1 + $0x498] sm:$0xff]
    %v228 = vld [vmem:[%s1 + $0x4a0] sm:$0xff]
    %v229 = vld [vmem:[%s1 + $0x4a8] sm:$0xff]
    %v230 = vld [vmem:[%s1 + $0x4b0] sm:$0xff]
    %v231 = vld [vmem:[%s1 + $0x4b8] sm:$0xff]
    %v232 = vld [vmem:[%s1 + $0x4c0] sm:$0xff]
    %v233 = vld [vmem:[%s1 + $0x4c8] sm:$0xff]
    %v234 = vld [vmem:[%s1 + $0x4d0] sm:$0xff]
    %v235 = vld [vmem:[%s1 + $0x4d8] sm:$0xff]
    %v236 = vld [vmem:[%s1 + $0x4e0] sm:$0xff]
    %v237 = vld [vmem:[%s1 + $0x4e8] sm:$0xff]
    %v238 = vld [vmem:[%s1 + $0x4f0] sm:$0xff]
    %v239 = vld [vmem:[%s1 + $0x4f8] sm:$0xff]
    %v240 = vld [vmem:[%s1 + $0x500] sm:$0xff]
    %v241 = vld [vmem:[%s1 + $0x508] sm:$0xff]
    %v242 = vld [vmem:[%s1 + $0x510] sm:$0xff]
    %v243 = vld [vmem:[%s1 + $0x518] sm:$0xff]
    %v244 = vld [vmem:[%s1 + $0x520] sm:$0xff]
    %v245 = vld [vmem:[%s1 + $0x528] sm:$0xff]
    %v246 = vld [vmem:[%s1 + $0x530] sm:$0xff]
    %v247 = vld [vmem:[%s1 + $0x538] sm:$0xff]
    %v248 = vld [vmem:[%s1 + $0x540] sm:$0xff]
    %v249 = vld [vmem:[%s1 + $0x548] sm:$0xff]
    %v250 = vld [vmem:[%s1 + $0x550] sm:$0xff]
    %v251 = vld [vmem:[%s1 + $0x558] sm:$0xff]
    %v252 = vld [vmem:[%s1 + $0x560] sm:$0xff]
    %v253 = vld [vmem:[%s1 + $0x568] sm:$0xff]
    %v254 = vld [vmem:[%s1 + $0x570] sm:$0xff]
    %v255 = vld [vmem:[%s1 + $0x578] sm:$0xff]
    %v256 = vld [vmem:[%s1 + $0x580] sm:$0xff]
    %v257 = vld [vmem:[%s1 + $0x588] sm:$0xff]
    %v258 = vld [vmem:[%s1 + $0x590] sm:$0xff]
    %v259 = vld [vmem:[%s1 + $0x598] sm:$0xff]
    %v260 = vld [vmem:[%s1 + $0x5a0] sm:$0xff]
    %v261 = vld [vmem:[%s1 + $0x5a8] sm:$0xff]
    %v262 = vld [vmem:[%s1 + $0x5b0] sm:$0xff]
    %v263 = vld [vmem:[%s1 + $0x5b8] sm:$0xff]
    %v264 = vld [vmem:[%s1 + $0x5c0] sm:$0xff]
    %v265 = vld [vmem:[%s1 + $0x5c8] sm:$0xff]
    %v266 = vld [vmem:[%s1 + $0x5d0] sm:$0xff]
    %v267 = vld [vmem:[%s1 + $0x5d8] sm:$0xff]
    %v268 = vld [vmem:[%s1 + $0x5e0] sm:$0xff]
    %v269 = vld [vmem:[%s1 + $0x5e8] sm:$0xff]
    %v270 = vld [vmem:[%s1 + $0x5f0] sm:$0xff]
    %v271 = vld [vmem:[%s1 + $0x5f8] sm:$0xff]
    %v272 = vld [vmem:[%s1 + $0x600] sm:$0xff]
    %v273 = vld [vmem:[%s1 + $0x608] sm:$0xff]
    %v274 = vld [vmem:[%s1 + $0x610] sm:$0xff]
    %v275 = vld [vmem:[%s1 + $0x618] sm:$0xff]
    %v276 = vld [vmem:[%s2] sm:$0xf]
    %v278 = vperm.slane %v276, 0
    %v279 = vperm.slane %v276, 1
    %v280 = vperm.slane %v276, 2
    %v281 = vperm.slane %v276, 3
    %v482 = vunpack.c.l.b16 %v80
    %v483 = vunpack.c.h.b16 %v80
    %v484 = vunpack.c.l.b16 %v81
    %v485 = vunpack.c.h.b16 %v81
    %v486 = vunpack.c.l.b16 %v82
    %v487 = vunpack.c.h.b16 %v82
    %v488 = vunpack.c.l.b16 %v83
    %v489 = vunpack.c.h.b16 %v83
    %v490 = vunpack.c.l.b16 %v84
    %v491 = vunpack.c.h.b16 %v84
    %v492 = vunpack.c.l.b16 %v85
    %v493 = vunpack.c.h.b16 %v85
    %v494 = vunpack.c.l.b16 %v86
    %v495 = vunpack.c.h.b16 %v86
    %v496 = vunpack.c.l.b16 %v87
    %v497 = vunpack.c.h.b16 %v87
    %v498 = vunpack.c.l.b16 %v88
    %v499 = vunpack.c.h.b16 %v88
    %v500 = vunpack.c.l.b16 %v89
    %v501 = vunpack.c.h.b16 %v89
    %v502 = vunpack.c.l.b16 %v90
    %v503 = vunpack.c.h.b16 %v90
    %v504 = vunpack.c.l.b16 %v91
    %v505 = vunpack.c.h.b16 %v91
    %v506 = vunpack.c.l.b16 %v92
    %v507 = vunpack.c.h.b16 %v92
    %v508 = vunpack.c.l.b16 %v93
    %v509 = vunpack.c.h.b16 %v93
    %v510 = vunpack.c.l.b16 %v94
    %v511 = vunpack.c.h.b16 %v94
    %v512 = vunpack.c.l.b16 %v95
    %v513 = vunpack.c.h.b16 %v95
    %v514 = vunpack.c.l.b16 %v96
    %v515 = vunpack.c.h.b16 %v96
    %v516 = vunpack.c.l.b16 %v97
    %v517 = vunpack.c.h.b16 %v97
    %v518 = vunpack.c.l.b16 %v98
    %v519 = vunpack.c.h.b16 %v98
    %v520 = vunpack.c.l.b16 %v99
    %v521 = vunpack.c.h.b16 %v99
    %v522 = vunpack.c.l.b16 %v100
    %v523 = vunpack.c.h.b16 %v100
    %v524 = vunpack.c.l.b16 %v101
    %v525 = vunpack.c.h.b16 %v101
    %v526 = vunpack.c.l.b16 %v102
    %v527 = vunpack.c.h.b16 %v102
    %v528 = vunpack.c.l.b16 %v103
    %v529 = vunpack.c.h.b16 %v103
    %v530 = vunpack.c.l.b16 %v104
    %v531 = vunpack.c.h.b16 %v104
    %v532 = vunpack.c.l.b16 %v105
    %v533 = vunpack.c.h.b16 %v105
    %v534 = vunpack.c.l.b16 %v106
    %v535 = vunpack.c.h.b16 %v106
    %v536 = vunpack.c.l.b16 %v107
    %v537 = vunpack.c.h.b16 %v107
    %v538 = vunpack.c.l.b16 %v108
    %v539 = vunpack.c.h.b16 %v108
    %v540 = vunpack.c.l.b16 %v109
    %v541 = vunpack.c.h.b16 %v109
    %v542 = vunpack.c.l.b16 %v110
    %v543 = vunpack.c.h.b16 %v110
    %v544 = vunpack.c.l.b16 %v111
    %v545 = vunpack.c.h.b16 %v111
    %v546 = vunpack.c.l.b16 %v112
    %v547 = vunpack.c.h.b16 %v112
    %v548 = vunpack.c.l.b16 %v113
    %v549 = vunpack.c.h.b16 %v113
    %v550 = vunpack.c.l.b16 %v114
    %v551 = vunpack.c.h.b16 %v114
    %v552 = vunpack.c.l.b16 %v115
    %v553 = vunpack.c.h.b16 %v115
    %v554 = vunpack.c.l.b16 %v116
    %v555 = vunpack.c.h.b16 %v116
    %v556 = vunpack.c.l.b16 %v117
    %v557 = vunpack.c.h.b16 %v117
    %v558 = vunpack.c.l.b16 %v118
    %v559 = vunpack.c.h.b16 %v118
    %v560 = vunpack.c.l.b16 %v119
    %v561 = vunpack.c.h.b16 %v119
    %v562 = vunpack.c.l.b16 %v120
    %v563 = vunpack.c.h.b16 %v120
    %v564 = vunpack.c.l.b16 %v121
    %v565 = vunpack.c.h.b16 %v121
    %v566 = vunpack.c.l.b16 %v122
    %v567 = vunpack.c.h.b16 %v122
    %v568 = vunpack.c.l.b16 %v123
    %v569 = vunpack.c.h.b16 %v123
    %v570 = vunpack.c.l.b16 %v124
    %v571 = vunpack.c.h.b16 %v124
    %v572 = vunpack.c.l.b16 %v125
    %v573 = vunpack.c.h.b16 %v125
    %v574 = vunpack.c.l.b16 %v126
    %v575 = vunpack.c.h.b16 %v126
    %v576 = vunpack.c.l.b16 %v127
    %v577 = vunpack.c.h.b16 %v127
    %v578 = vunpack.c.l.b16 %v128
    %v579 = vunpack.c.h.b16 %v128
    %v580 = vunpack.c.l.b16 %v129
    %v581 = vunpack.c.h.b16 %v129
    %v582 = vunpack.c.l.b16 %v130
    %v583 = vunpack.c.h.b16 %v130
    %v584 = vunpack.c.l.b16 %v131
    %v585 = vunpack.c.h.b16 %v131
    %v586 = vunpack.c.l.b16 %v132
    %v587 = vunpack.c.h.b16 %v132
    %v588 = vunpack.c.l.b16 %v133
    %v589 = vunpack.c.h.b16 %v133
    %v590 = vunpack.c.l.b16 %v134
    %v591 = vunpack.c.h.b16 %v134
    %v592 = vunpack.c.l.b16 %v135
    %v593 = vunpack.c.h.b16 %v135
    %v594 = vunpack.c.l.b16 %v136
    %v595 = vunpack.c.h.b16 %v136
    %v596 = vunpack.c.l.b16 %v137
    %v597 = vunpack.c.h.b16 %v137
    %v598 = vunpack.c.l.b16 %v138
    %v599 = vunpack.c.h.b16 %v138
    %v600 = vunpack.c.l.b16 %v139
    %v601 = vunpack.c.h.b16 %v139
    %v602 = vunpack.c.l.b16 %v140
    %v603 = vunpack.c.h.b16 %v140
    %v604 = vunpack.c.l.b16 %v141
    %v605 = vunpack.c.h.b16 %v141
    %v606 = vunpack.c.l.b16 %v142
    %v607 = vunpack.c.h.b16 %v142
    %v608 = vunpack.c.l.b16 %v143
    %v609 = vunpack.c.h.b16 %v143
    %v610 = vunpack.c.l.b16 %v144
    %v611 = vunpack.c.h.b16 %v144
    %v612 = vunpack.c.l.b16 %v145
    %v613 = vunpack.c.h.b16 %v145
    %v614 = vunpack.c.l.b16 %v146
    %v615 = vunpack.c.h.b16 %v146
    %v616 = vunpack.c.l.b16 %v147
    %v617 = vunpack.c.h.b16 %v147
    %v618 = vunpack.c.l.b16 %v148
    %v619 = vunpack.c.h.b16 %v148
    %v620 = vunpack.c.l.b16 %v149
    %v621 = vunpack.c.h.b16 %v149
    %v622 = vunpack.c.l.b16 %v150
    %v623 = vunpack.c.h.b16 %v150
    %v624 = vunpack.c.l.b16 %v151
    %v625 = vunpack.c.h.b16 %v151
    %v626 = vunpack.c.l.b16 %v152
    %v627 = vunpack.c.h.b16 %v152
    %v628 = vunpack.c.l.b16 %v153
    %v629 = vunpack.c.h.b16 %v153
    %v630 = vunpack.c.l.b16 %v154
    %v631 = vunpack.c.h.b16 %v154
    %v632 = vunpack.c.l.b16 %v155
    %v633 = vunpack.c.h.b16 %v155
    %v634 = vunpack.c.l.b16 %v156
    %v635 = vunpack.c.h.b16 %v156
    %v636 = vunpack.c.l.b16 %v157
    %v637 = vunpack.c.h.b16 %v157
    %v638 = vunpack.c.l.b16 %v158
    %v639 = vunpack.c.h.b16 %v158
    %v640 = vunpack.c.l.b16 %v159
    %v641 = vunpack.c.h.b16 %v159
    %v642 = vunpack.c.l.b16 %v160
    %v643 = vunpack.c.h.b16 %v160
    %v644 = vunpack.c.l.b16 %v161
    %v645 = vunpack.c.h.b16 %v161
    %v646 = vunpack.c.l.b16 %v162
    %v647 = vunpack.c.h.b16 %v162
    %v648 = vunpack.c.l.b16 %v163
    %v649 = vunpack.c.h.b16 %v163
    %v650 = vunpack.c.l.b16 %v164
    %v651 = vunpack.c.h.b16 %v164
    %v652 = vunpack.c.l.b16 %v165
    %v653 = vunpack.c.h.b16 %v165
    %v654 = vunpack.c.l.b16 %v166
    %v655 = vunpack.c.h.b16 %v166
    %v656 = vunpack.c.l.b16 %v167
    %v657 = vunpack.c.h.b16 %v167
    %v658 = vunpack.c.l.b16 %v168
    %v659 = vunpack.c.h.b16 %v168
    %v660 = vunpack.c.l.b16 %v169
    %v661 = vunpack.c.h.b16 %v169
    %v662 = vunpack.c.l.b16 %v170
    %v663 = vunpack.c.h.b16 %v170
    %v664 = vunpack.c.l.b16 %v171
    %v665 = vunpack.c.h.b16 %v171
    %v666 = vunpack.c.l.b16 %v172
    %v667 = vunpack.c.h.b16 %v172
    %v668 = vunpack.c.l.b16 %v173
    %v669 = vunpack.c.h.b16 %v173
    %v670 = vunpack.c.l.b16 %v174
    %v671 = vunpack.c.h.b16 %v174
    %v672 = vunpack.c.l.b16 %v175
    %v673 = vunpack.c.h.b16 %v175
    %v674 = vunpack.c.l.b16 %v176
    %v675 = vunpack.c.h.b16 %v176
    %v676 = vunpack.c.l.b16 %v177
    %v677 = vunpack.c.h.b16 %v177
    %v678 = vunpack.c.l.b16 %v178
    %v679 = vunpack.c.h.b16 %v178
    %v680 = vunpack.c.l.b16 %v179
    %v681 = vunpack.c.h.b16 %v179
    %v682 = vunpack.c.l.b16 %v180
    %v683 = vunpack.c.h.b16 %v180
    %v684 = vunpack.c.l.b16 %v181
    %v685 = vunpack.c.h.b16 %v181
    %v686 = vunpack.c.l.b16 %v182
    %v687 = vunpack.c.h.b16 %v182
    %v688 = vunpack.c.l.b16 %v183
    %v689 = vunpack.c.h.b16 %v183
    %v690 = vunpack.c.l.b16 %v184
    %v691 = vunpack.c.h.b16 %v184
    %v692 = vunpack.c.l.b16 %v185
    %v693 = vunpack.c.h.b16 %v185
    %v694 = vunpack.c.l.b16 %v186
    %v695 = vunpack.c.h.b16 %v186
    %v696 = vunpack.c.l.b16 %v187
    %v697 = vunpack.c.h.b16 %v187
    %v698 = vunpack.c.l.b16 %v188
    %v699 = vunpack.c.h.b16 %v188
    %v700 = vunpack.c.l.b16 %v189
    %v701 = vunpack.c.h.b16 %v189
    %v702 = vunpack.c.l.b16 %v190
    %v703 = vunpack.c.h.b16 %v190
    %v704 = vunpack.c.l.b16 %v191
    %v705 = vunpack.c.h.b16 %v191
    %v706 = vunpack.c.l.b16 %v192
    %v707 = vunpack.c.h.b16 %v192
    %v708 = vunpack.c.l.b16 %v193
    %v709 = vunpack.c.h.b16 %v193
    %v710 = vunpack.c.l.b16 %v194
    %v711 = vunpack.c.h.b16 %v194
    %v712 = vunpack.c.l.b16 %v195
    %v713 = vunpack.c.h.b16 %v195
    %v714 = vunpack.c.l.b16 %v196
    %v715 = vunpack.c.h.b16 %v196
    %v716 = vunpack.c.l.b16 %v197
    %v717 = vunpack.c.h.b16 %v197
    %v718 = vunpack.c.l.b16 %v198
    %v719 = vunpack.c.h.b16 %v198
    %v720 = vunpack.c.l.b16 %v199
    %v721 = vunpack.c.h.b16 %v199
    %v722 = vunpack.c.l.b16 %v200
    %v723 = vunpack.c.h.b16 %v200
    %v724 = vunpack.c.l.b16 %v201
    %v725 = vunpack.c.h.b16 %v201
    %v726 = vunpack.c.l.b16 %v202
    %v727 = vunpack.c.h.b16 %v202
    %v728 = vunpack.c.l.b16 %v203
    %v729 = vunpack.c.h.b16 %v203
    %v730 = vunpack.c.l.b16 %v204
    %v731 = vunpack.c.h.b16 %v204
    %v732 = vunpack.c.l.b16 %v205
    %v733 = vunpack.c.h.b16 %v205
    %v734 = vunpack.c.l.b16 %v206
    %v735 = vunpack.c.h.b16 %v206
    %v736 = vunpack.c.l.b16 %v207
    %v737 = vunpack.c.h.b16 %v207
    %v738 = vunpack.c.l.b16 %v208
    %v739 = vunpack.c.h.b16 %v208
    %v740 = vunpack.c.l.b16 %v209
    %v741 = vunpack.c.h.b16 %v209
    %v742 = vunpack.c.l.b16 %v210
    %v743 = vunpack.c.h.b16 %v210
    %v744 = vunpack.c.l.b16 %v211
    %v745 = vunpack.c.h.b16 %v211
    %v746 = vunpack.c.l.b16 %v212
    %v747 = vunpack.c.h.b16 %v212
    %v748 = vunpack.c.l.b16 %v213
    %v749 = vunpack.c.h.b16 %v213
    %v750 = vunpack.c.l.b16 %v214
    %v751 = vunpack.c.h.b16 %v214
    %v752 = vunpack.c.l.b16 %v215
    %v753 = vunpack.c.h.b16 %v215
    %v754 = vunpack.c.l.b16 %v216
    %v755 = vunpack.c.h.b16 %v216
    %v756 = vunpack.c.l.b16 %v217
    %v757 = vunpack.c.h.b16 %v217
    %v758 = vunpack.c.l.b16 %v218
    %v759 = vunpack.c.h.b16 %v218
    %v760 = vunpack.c.l.b16 %v219
    %v761 = vunpack.c.h.b16 %v219
    %v762 = vunpack.c.l.b16 %v220
    %v763 = vunpack.c.h.b16 %v220
    %v764 = vunpack.c.l.b16 %v221
    %v765 = vunpack.c.h.b16 %v221
    %v766 = vunpack.c.l.b16 %v222
    %v767 = vunpack.c.h.b16 %v222
    %v768 = vunpack.c.l.b16 %v223
    %v769 = vunpack.c.h.b16 %v223
    %v770 = vunpack.c.l.b16 %v224
    %v771 = vunpack.c.h.b16 %v224
    %v772 = vunpack.c.l.b16 %v225
    %v773 = vunpack.c.h.b16 %v225
    %v774 = vunpack.c.l.b16 %v226
    %v775 = vunpack.c.h.b16 %v226
    %v776 = vunpack.c.l.b16 %v227
    %v777 = vunpack.c.h.b16 %v227
    %v778 = vunpack.c.l.b16 %v228
    %v779 = vunpack.c.h.b16 %v228
    %v780 = vunpack.c.l.b16 %v229
    %v781 = vunpack.c.h.b16 %v229
    %v782 = vunpack.c.l.b16 %v230
    %v783 = vunpack.c.h.b16 %v230
    %v784 = vunpack.c.l.b16 %v231
    %v785 = vunpack.c.h.b16 %v231
    %v786 = vunpack.c.l.b16 %v232
    %v787 = vunpack.c.h.b16 %v232
    %v788 = vunpack.c.l.b16 %v233
    %v789 = vunpack.c.h.b16 %v233
    %v790 = vunpack.c.l.b16 %v234
    %v791 = vunpack.c.h.b16 %v234
    %v792 = vunpack.c.l.b16 %v235
    %v793 = vunpack.c.h.b16 %v235
    %v794 = vunpack.c.l.b16 %v236
    %v795 = vunpack.c.h.b16 %v236
    %v796 = vunpack.c.l.b16 %v237
    %v797 = vunpack.c.h.b16 %v237
    %v798 = vunpack.c.l.b16 %v238
    %v799 = vunpack.c.h.b16 %v238
    %v800 = vunpack.c.l.b16 %v239
    %v801 = vunpack.c.h.b16 %v239
    %v802 = vunpack.c.l.b16 %v240
    %v803 = vunpack.c.h.b16 %v240
    %v804 = vunpack.c.l.b16 %v241
    %v805 = vunpack.c.h.b16 %v241
    %v806 = vunpack.c.l.b16 %v242
    %v807 = vunpack.c.h.b16 %v242
    %v808 = vunpack.c.l.b16 %v243
    %v809 = vunpack.c.h.b16 %v243
    %v810 = vunpack.c.l.b16 %v244
    %v811 = vunpack.c.h.b16 %v244
    %v812 = vunpack.c.l.b16 %v245
    %v813 = vunpack.c.h.b16 %v245
    %v814 = vunpack.c.l.b16 %v246
    %v815 = vunpack.c.h.b16 %v246
    %v816 = vunpack.c.l.b16 %v247
    %v817 = vunpack.c.h.b16 %v247
    %v818 = vunpack.c.l.b16 %v248
    %v819 = vunpack.c.h.b16 %v248
    %v820 = vunpack.c.l.b16 %v249
    %v821 = vunpack.c.h.b16 %v249
    %v822 = vunpack.c.l.b16 %v250
    %v823 = vunpack.c.h.b16 %v250
    %v824 = vunpack.c.l.b16 %v251
    %v825 = vunpack.c.h.b16 %v251
    %v826 = vunpack.c.l.b16 %v252
    %v827 = vunpack.c.h.b16 %v252
    %v828 = vunpack.c.l.b16 %v253
    %v829 = vunpack.c.h.b16 %v253
    %v830 = vunpack.c.l.b16 %v254
    %v831 = vunpack.c.h.b16 %v254
    %v832 = vunpack.c.l.b16 %v255
    %v833 = vunpack.c.h.b16 %v255
    %v834 = vunpack.c.l.b16 %v256
    %v835 = vunpack.c.h.b16 %v256
    %v836 = vunpack.c.l.b16 %v257
    %v837 = vunpack.c.h.b16 %v257
    %v838 = vunpack.c.l.b16 %v258
    %v839 = vunpack.c.h.b16 %v258
    %v840 = vunpack.c.l.b16 %v259
    %v841 = vunpack.c.h.b16 %v259
    %v842 = vunpack.c.l.b16 %v260
    %v843 = vunpack.c.h.b16 %v260
    %v844 = vunpack.c.l.b16 %v261
    %v845 = vunpack.c.h.b16 %v261
    %v846 = vunpack.c.l.b16 %v262
    %v847 = vunpack.c.h.b16 %v262
    %v848 = vunpack.c.l.b16 %v263
    %v849 = vunpack.c.h.b16 %v263
    %v850 = vunpack.c.l.b16 %v264
    %v851 = vunpack.c.h.b16 %v264
    %v852 = vunpack.c.l.b16 %v265
    %v853 = vunpack.c.h.b16 %v265
    %v854 = vunpack.c.l.b16 %v266
    %v855 = vunpack.c.h.b16 %v266
    %v856 = vunpack.c.l.b16 %v267
    %v857 = vunpack.c.h.b16 %v267
    %v858 = vunpack.c.l.b16 %v268
    %v859 = vunpack.c.h.b16 %v268
    %v860 = vunpack.c.l.b16 %v269
    %v861 = vunpack.c.h.b16 %v269
    %v862 = vunpack.c.l.b16 %v270
    %v863 = vunpack.c.h.b16 %v270
    %v864 = vunpack.c.l.b16 %v271
    %v865 = vunpack.c.h.b16 %v271
    %v866 = vunpack.c.l.b16 %v272
    %v867 = vunpack.c.h.b16 %v272
    %v868 = vunpack.c.l.b16 %v273
    %v869 = vunpack.c.h.b16 %v273
    %v870 = vunpack.c.l.b16 %v274
    %v871 = vunpack.c.h.b16 %v274
    %v872 = vunpack.c.l.b16 %v275
    %v873 = vunpack.c.h.b16 %v275
    %v874 = vpack.c.b16 %v486, %v482
    %v875 = vpack.c.b16 %v487, %v483
    %v876 = vpack.c.b16 %v488, %v484
    %v877 = vpack.c.b16 %v489, %v485
    %v878 = vpack.c.b16 %v494, %v490
    %v879 = vpack.c.b16 %v495, %v491
    %v880 = vpack.c.b16 %v496, %v492
    %v881 = vpack.c.b16 %v497, %v493
    %v882 = vpack.c.b16 %v502, %v498
    %v883 = vpack.c.b16 %v503, %v499
    %v884 = vpack.c.b16 %v504, %v500
    %v885 = vpack.c.b16 %v505, %v501
    %v886 = vpack.c.b16 %v510, %v506
    %v887 = vpack.c.b16 %v511, %v507
    %v888 = vpack.c.b16 %v512, %v508
    %v889 = vpack.c.b16 %v513, %v509
    %v890 = vpack.c.b16 %v518, %v514
    %v891 = vpack.c.b16 %v519, %v515
    %v892 = vpack.c.b16 %v520, %v516
    %v893 = vpack.c.b16 %v521, %v517
    %v894 = vpack.c.b16 %v526, %v522
    %v895 = vpack.c.b16 %v527, %v523
    %v896 = vpack.c.b16 %v528, %v524
    %v897 = vpack.c.b16 %v529, %v525
    %v898 = vpack.c.b16 %v534, %v530
    %v899 = vpack.c.b16 %v535, %v531
    %v900 = vpack.c.b16 %v536, %v532
    %v901 = vpack.c.b16 %v537, %v533
    %v902 = vpack.c.b16 %v542, %v538
    %v903 = vpack.c.b16 %v543, %v539
    %v904 = vpack.c.b16 %v544, %v540
    %v905 = vpack.c.b16 %v545, %v541
    %v906 = vpack.c.b16 %v550, %v546
    %v907 = vpack.c.b16 %v551, %v547
    %v908 = vpack.c.b16 %v552, %v548
    %v909 = vpack.c.b16 %v553, %v549
    %v910 = vpack.c.b16 %v558, %v554
    %v911 = vpack.c.b16 %v559, %v555
    %v912 = vpack.c.b16 %v560, %v556
    %v913 = vpack.c.b16 %v561, %v557
    %v914 = vpack.c.b16 %v566, %v562
    %v915 = vpack.c.b16 %v567, %v563
    %v916 = vpack.c.b16 %v568, %v564
    %v917 = vpack.c.b16 %v569, %v565
    %v918 = vpack.c.b16 %v574, %v570
    %v919 = vpack.c.b16 %v575, %v571
    %v920 = vpack.c.b16 %v576, %v572
    %v921 = vpack.c.b16 %v577, %v573
    %v922 = vpack.c.b16 %v582, %v578
    %v923 = vpack.c.b16 %v583, %v579
    %v924 = vpack.c.b16 %v584, %v580
    %v925 = vpack.c.b16 %v585, %v581
    %v926 = vpack.c.b16 %v590, %v586
    %v927 = vpack.c.b16 %v591, %v587
    %v928 = vpack.c.b16 %v592, %v588
    %v929 = vpack.c.b16 %v593, %v589
    %v930 = vpack.c.b16 %v598, %v594
    %v931 = vpack.c.b16 %v599, %v595
    %v932 = vpack.c.b16 %v600, %v596
    %v933 = vpack.c.b16 %v601, %v597
    %v934 = vpack.c.b16 %v606, %v602
    %v935 = vpack.c.b16 %v607, %v603
    %v936 = vpack.c.b16 %v608, %v604
    %v937 = vpack.c.b16 %v609, %v605
    %v938 = vpack.c.b16 %v614, %v610
    %v939 = vpack.c.b16 %v615, %v611
    %v940 = vpack.c.b16 %v616, %v612
    %v941 = vpack.c.b16 %v617, %v613
    %v942 = vpack.c.b16 %v622, %v618
    %v943 = vpack.c.b16 %v623, %v619
    %v944 = vpack.c.b16 %v624, %v620
    %v945 = vpack.c.b16 %v625, %v621
    %v946 = vpack.c.b16 %v630, %v626
    %v947 = vpack.c.b16 %v631, %v627
    %v948 = vpack.c.b16 %v632, %v628
    %v949 = vpack.c.b16 %v633, %v629
    %v950 = vpack.c.b16 %v638, %v634
    %v951 = vpack.c.b16 %v639, %v635
    %v952 = vpack.c.b16 %v640, %v636
    %v953 = vpack.c.b16 %v641, %v637
    %v954 = vpack.c.b16 %v646, %v642
    %v955 = vpack.c.b16 %v647, %v643
    %v956 = vpack.c.b16 %v648, %v644
    %v957 = vpack.c.b16 %v649, %v645
    %v958 = vpack.c.b16 %v654, %v650
    %v959 = vpack.c.b16 %v655, %v651
    %v960 = vpack.c.b16 %v656, %v652
    %v961 = vpack.c.b16 %v657, %v653
    %v962 = vpack.c.b16 %v662, %v658
    %v963 = vpack.c.b16 %v663, %v659
    %v964 = vpack.c.b16 %v664, %v660
    %v965 = vpack.c.b16 %v665, %v661
    %v966 = vpack.c.b16 %v670, %v666
    %v967 = vpack.c.b16 %v671, %v667
    %v968 = vpack.c.b16 %v672, %v668
    %v969 = vpack.c.b16 %v673, %v669
    %v970 = vpack.c.b16 %v678, %v674
    %v971 = vpack.c.b16 %v679, %v675
    %v972 = vpack.c.b16 %v680, %v676
    %v973 = vpack.c.b16 %v681, %v677
    %v974 = vpack.c.b16 %v686, %v682
    %v975 = vpack.c.b16 %v687, %v683
    %v976 = vpack.c.b16 %v688, %v684
    %v977 = vpack.c.b16 %v689, %v685
    %v978 = vpack.c.b16 %v694, %v690
    %v979 = vpack.c.b16 %v695, %v691
    %v980 = vpack.c.b16 %v696, %v692
    %v981 = vpack.c.b16 %v697, %v693
    %v982 = vpack.c.b16 %v702, %v698
    %v983 = vpack.c.b16 %v703, %v699
    %v984 = vpack.c.b16 %v704, %v700
    %v985 = vpack.c.b16 %v705, %v701
    %v986 = vpack.c.b16 %v710, %v706
    %v987 = vpack.c.b16 %v711, %v707
    %v988 = vpack.c.b16 %v712, %v708
    %v989 = vpack.c.b16 %v713, %v709
    %v990 = vpack.c.b16 %v718, %v714
    %v991 = vpack.c.b16 %v719, %v715
    %v992 = vpack.c.b16 %v720, %v716
    %v993 = vpack.c.b16 %v721, %v717
    %v994 = vpack.c.b16 %v726, %v722
    %v995 = vpack.c.b16 %v727, %v723
    %v996 = vpack.c.b16 %v728, %v724
    %v997 = vpack.c.b16 %v729, %v725
    %v998 = vpack.c.b16 %v734, %v730
    %v999 = vpack.c.b16 %v735, %v731
    %v1000 = vpack.c.b16 %v736, %v732
    %v1001 = vpack.c.b16 %v737, %v733
    %v1002 = vpack.c.b16 %v742, %v738
    %v1003 = vpack.c.b16 %v743, %v739
    %v1004 = vpack.c.b16 %v744, %v740
    %v1005 = vpack.c.b16 %v745, %v741
    %v1006 = vpack.c.b16 %v750, %v746
    %v1007 = vpack.c.b16 %v751, %v747
    %v1008 = vpack.c.b16 %v752, %v748
    %v1009 = vpack.c.b16 %v753, %v749
    %v1010 = vpack.c.b16 %v758, %v754
    %v1011 = vpack.c.b16 %v759, %v755
    %v1012 = vpack.c.b16 %v760, %v756
    %v1013 = vpack.c.b16 %v761, %v757
    %v1014 = vpack.c.b16 %v766, %v762
    %v1015 = vpack.c.b16 %v767, %v763
    %v1016 = vpack.c.b16 %v768, %v764
    %v1017 = vpack.c.b16 %v769, %v765
    %v1018 = vpack.c.b16 %v774, %v770
    %v1019 = vpack.c.b16 %v775, %v771
    %v1020 = vpack.c.b16 %v776, %v772
    %v1021 = vpack.c.b16 %v777, %v773
    %v1022 = vpack.c.b16 %v782, %v778
    %v1023 = vpack.c.b16 %v783, %v779
    %v1024 = vpack.c.b16 %v784, %v780
    %v1025 = vpack.c.b16 %v785, %v781
    %v1026 = vpack.c.b16 %v790, %v786
    %v1027 = vpack.c.b16 %v791, %v787
    %v1028 = vpack.c.b16 %v792, %v788
    %v1029 = vpack.c.b16 %v793, %v789
    %v1030 = vpack.c.b16 %v798, %v794
    %v1031 = vpack.c.b16 %v799, %v795
    %v1032 = vpack.c.b16 %v800, %v796
    %v1033 = vpack.c.b16 %v801, %v797
    %v1034 = vpack.c.b16 %v806, %v802
    %v1035 = vpack.c.b16 %v807, %v803
    %v1036 = vpack.c.b16 %v808, %v804
    %v1037 = vpack.c.b16 %v809, %v805
    %v1038 = vpack.c.b16 %v814, %v810
    %v1039 = vpack.c.b16 %v815, %v811
    %v1040 = vpack.c.b16 %v816, %v812
    %v1041 = vpack.c.b16 %v817, %v813
    %v1042 = vpack.c.b16 %v822, %v818
    %v1043 = vpack.c.b16 %v823, %v819
    %v1044 = vpack.c.b16 %v824, %v820
    %v1045 = vpack.c.b16 %v825, %v821
    %v1046 = vpack.c.b16 %v830, %v826
    %v1047 = vpack.c.b16 %v831, %v827
    %v1048 = vpack.c.b16 %v832, %v828
    %v1049 = vpack.c.b16 %v833, %v829
    %v1050 = vpack.c.b16 %v838, %v834
    %v1051 = vpack.c.b16 %v839, %v835
    %v1052 = vpack.c.b16 %v840, %v836
    %v1053 = vpack.c.b16 %v841, %v837
    %v1054 = vpack.c.b16 %v846, %v842
    %v1055 = vpack.c.b16 %v847, %v843
    %v1056 = vpack.c.b16 %v848, %v844
    %v1057 = vpack.c.b16 %v849, %v845
    %v1058 = vpack.c.b16 %v854, %v850
    %v1059 = vpack.c.b16 %v855, %v851
    %v1060 = vpack.c.b16 %v856, %v852
    %v1061 = vpack.c.b16 %v857, %v853
    %v1062 = vpack.c.b16 %v862, %v858
    %v1063 = vpack.c.b16 %v863, %v859
    %v1064 = vpack.c.b16 %v864, %v860
    %v1065 = vpack.c.b16 %v865, %v861
    %v1066 = vpack.c.b16 %v870, %v866
    %v1067 = vpack.c.b16 %v871, %v867
    %v1068 = vpack.c.b16 %v872, %v868
    %v1069 = vpack.c.b16 %v873, %v869
    %vm1266 = vcmask 130048
    %v1268 = vsel %vm1266, %v79, 0
    %1270 = vmatpush.bf16.msra.mxu0 %v902
    %1271 = vmatpush.bf16.msra.mxu0 %v898
    %1272 = vmatpush.bf16.msra.mxu0 %v894
    %1273 = vmatpush.bf16.msra.mxu0 %v890
    %1274 = vmatpush.bf16.msra.mxu0 %v886
    %1275 = vmatpush.bf16.msra.mxu0 %v882
    %1276 = vmatpush.bf16.msra.mxu0 %v878
    %1277 = vmatpush.bf16.msra.mxu0 %v874
    %1278 = vmatmul.bf16.gmra.mxu0 %v73
    %v1279 = vpop.f32.mrf.mxu0
    %v1280 = vadd.f32 %v278, %v1279
    %v1281 = vpop.f32.mrf.mxu0
    %1282 = vdwg.mxu0
    %1283 = vmatpush.bf16.msra.mxu0 %v934
    %1284 = vmatpush.bf16.msra.mxu0 %v930
    %1285 = vmatpush.bf16.msra.mxu0 %v926
    %1286 = vmatpush.bf16.msra.mxu0 %v922
    %1287 = vmatpush.bf16.msra.mxu0 %v918
    %1288 = vmatpush.bf16.msra.mxu0 %v914
    %1289 = vmatpush.bf16.msra.mxu0 %v910
    %1290 = vmatpush.bf16.msra.mxu0 %v906
    %1291 = vmatmul.bf16.gmra.mxu0 %v74
    %v1292 = vpop.f32.mrf.mxu0
    %v1293 = vadd.f32 %v1280, %v1292
    %v1294 = vpop.f32.mrf.mxu0
    %1295 = vdwg.mxu0
    %1296 = vmatpush.bf16.msra.mxu0 %v966
    %1297 = vmatpush.bf16.msra.mxu0 %v962
    %1298 = vmatpush.bf16.msra.mxu0 %v958
    %1299 = vmatpush.bf16.msra.mxu0 %v954
    %1300 = vmatpush.bf16.msra.mxu0 %v950
    %1301 = vmatpush.bf16.msra.mxu0 %v946
    %1302 = vmatpush.bf16.msra.mxu0 %v942
    %1303 = vmatpush.bf16.msra.mxu0 %v938
    %1304 = vmatmul.bf16.gmra.mxu0 %v75
    %v1305 = vpop.f32.mrf.mxu0
    %v1306 = vadd.f32 %v1293, %v1305
    %v1307 = vpop.f32.mrf.mxu0
    %1308 = vdwg.mxu0
    %1309 = vmatpush.bf16.msra.mxu0 %v998
    %1310 = vmatpush.bf16.msra.mxu0 %v994
    %1311 = vmatpush.bf16.msra.mxu0 %v990
    %1312 = vmatpush.bf16.msra.mxu0 %v986
    %1313 = vmatpush.bf16.msra.mxu0 %v982
    %1314 = vmatpush.bf16.msra.mxu0 %v978
    %1315 = vmatpush.bf16.msra.mxu0 %v974
    %1316 = vmatpush.bf16.msra.mxu0 %v970
    %1317 = vmatmul.bf16.gmra.mxu0 %v76
    %v1318 = vpop.f32.mrf.mxu0
    %v1319 = vadd.f32 %v1306, %v1318
    %v1320 = vpop.f32.mrf.mxu0
    %1321 = vdwg.mxu0
    %1322 = vmatpush.bf16.msra.mxu0 %v1030
    %1323 = vmatpush.bf16.msra.mxu0 %v1026
    %1324 = vmatpush.bf16.msra.mxu0 %v1022
    %1325 = vmatpush.bf16.msra.mxu0 %v1018
    %1326 = vmatpush.bf16.msra.mxu0 %v1014
    %1327 = vmatpush.bf16.msra.mxu0 %v1010
    %1328 = vmatpush.bf16.msra.mxu0 %v1006
    %1329 = vmatpush.bf16.msra.mxu0 %v1002
    %1330 = vmatmul.bf16.gmra.mxu0 %v77
    %v1331 = vpop.f32.mrf.mxu0
    %v1332 = vadd.f32 %v1319, %v1331
    %v1333 = vpop.f32.mrf.mxu0
    %1334 = vdwg.mxu0
    %1335 = vmatpush.bf16.msra.mxu0 %v1062
    %1336 = vmatpush.bf16.msra.mxu0 %v1058
    %1337 = vmatpush.bf16.msra.mxu0 %v1054
    %1338 = vmatpush.bf16.msra.mxu0 %v1050
    %1339 = vmatpush.bf16.msra.mxu0 %v1046
    %1340 = vmatpush.bf16.msra.mxu0 %v1042
    %1341 = vmatpush.bf16.msra.mxu0 %v1038
    %1342 = vmatpush.bf16.msra.mxu0 %v1034
    %1343 = vmatmul.bf16.gmra.mxu0 %v78
    %v1344 = vpop.f32.mrf.mxu0
    %v1345 = vadd.f32 %v1332, %v1344
    %v1346 = vpop.f32.mrf.mxu0
    %1347 = vdwg.mxu0
    %1348 = vmatpush.bf16.msra.mxu0 0
    %1349 = vmatpush.bf16.msra.mxu0 0
    %1350 = vmatpush.bf16.msra.mxu0 0
    %1351 = vmatpush.bf16.msra.mxu0 0
    %1352 = vmatpush.bf16.msra.mxu0 0
    %1353 = vmatpush.bf16.msra.mxu0 0
    %1354 = vmatpush.bf16.msra.mxu0 0
    %1355 = vmatpush.bf16.msra.mxu0 %v1066
    %1356 = vmatmul.bf16.gmra.mxu0 %v1268
    %v1357 = vpop.f32.mrf.mxu0
    %v1358 = vadd.f32 %v1345, %v1357
    %v1359 = vpop.f32.mrf.mxu0
    %1360 = vdwg.mxu0
    %1361 = vmatpush.bf16.msra.mxu0 %v903
    %1362 = vmatpush.bf16.msra.mxu0 %v899
    %1363 = vmatpush.bf16.msra.mxu0 %v895
    %1364 = vmatpush.bf16.msra.mxu0 %v891
    %1365 = vmatpush.bf16.msra.mxu0 %v887
    %1366 = vmatpush.bf16.msra.mxu0 %v883
    %1367 = vmatpush.bf16.msra.mxu0 %v879
    %1368 = vmatpush.bf16.msra.mxu0 %v875
    %1369 = vmatmul.bf16.gmra.mxu0 %v73
    %v1370 = vpop.f32.mrf.mxu0
    %v1371 = vadd.f32 %v279, %v1370
    %v1372 = vpop.f32.mrf.mxu0
    %1373 = vdwg.mxu0
    %1374 = vmatpush.bf16.msra.mxu0 %v935
    %1375 = vmatpush.bf16.msra.mxu0 %v931
    %1376 = vmatpush.bf16.msra.mxu0 %v927
    %1377 = vmatpush.bf16.msra.mxu0 %v923
    %1378 = vmatpush.bf16.msra.mxu0 %v919
    %1379 = vmatpush.bf16.msra.mxu0 %v915
    %1380 = vmatpush.bf16.msra.mxu0 %v911
    %1381 = vmatpush.bf16.msra.mxu0 %v907
    %1382 = vmatmul.bf16.gmra.mxu0 %v74
    %v1383 = vpop.f32.mrf.mxu0
    %v1384 = vadd.f32 %v1371, %v1383
    %v1385 = vpop.f32.mrf.mxu0
    %1386 = vdwg.mxu0
    %1387 = vmatpush.bf16.msra.mxu0 %v967
    %1388 = vmatpush.bf16.msra.mxu0 %v963
    %1389 = vmatpush.bf16.msra.mxu0 %v959
    %1390 = vmatpush.bf16.msra.mxu0 %v955
    %1391 = vmatpush.bf16.msra.mxu0 %v951
    %1392 = vmatpush.bf16.msra.mxu0 %v947
    %1393 = vmatpush.bf16.msra.mxu0 %v943
    %1394 = vmatpush.bf16.msra.mxu0 %v939
    %1395 = vmatmul.bf16.gmra.mxu0 %v75
    %v1396 = vpop.f32.mrf.mxu0
    %v1397 = vadd.f32 %v1384, %v1396
    %v1398 = vpop.f32.mrf.mxu0
    %1399 = vdwg.mxu0
    %1400 = vmatpush.bf16.msra.mxu0 %v999
    %1401 = vmatpush.bf16.msra.mxu0 %v995
    %1402 = vmatpush.bf16.msra.mxu0 %v991
    %1403 = vmatpush.bf16.msra.mxu0 %v987
    %1404 = vmatpush.bf16.msra.mxu0 %v983
    %1405 = vmatpush.bf16.msra.mxu0 %v979
    %1406 = vmatpush.bf16.msra.mxu0 %v975
    %1407 = vmatpush.bf16.msra.mxu0 %v971
    %1408 = vmatmul.bf16.gmra.mxu0 %v76
    %v1409 = vpop.f32.mrf.mxu0
    %v1410 = vadd.f32 %v1397, %v1409
    %v1411 = vpop.f32.mrf.mxu0
    %1412 = vdwg.mxu0
    %1413 = vmatpush.bf16.msra.mxu0 %v1031
    %1414 = vmatpush.bf16.msra.mxu0 %v1027
    %1415 = vmatpush.bf16.msra.mxu0 %v1023
    %1416 = vmatpush.bf16.msra.mxu0 %v1019
    %1417 = vmatpush.bf16.msra.mxu0 %v1015
    %1418 = vmatpush.bf16.msra.mxu0 %v1011
    %1419 = vmatpush.bf16.msra.mxu0 %v1007
    %1420 = vmatpush.bf16.msra.mxu0 %v1003
    %1421 = vmatmul.bf16.gmra.mxu0 %v77
    %v1422 = vpop.f32.mrf.mxu0
    %v1423 = vadd.f32 %v1410, %v1422
    %v1424 = vpop.f32.mrf.mxu0
    %1425 = vdwg.mxu0
    %1426 = vmatpush.bf16.msra.mxu0 %v1063
    %1427 = vmatpush.bf16.msra.mxu0 %v1059
    %1428 = vmatpush.bf16.msra.mxu0 %v1055
    %1429 = vmatpush.bf16.msra.mxu0 %v1051
    %1430 = vmatpush.bf16.msra.mxu0 %v1047
    %1431 = vmatpush.bf16.msra.mxu0 %v1043
    %1432 = vmatpush.bf16.msra.mxu0 %v1039
    %1433 = vmatpush.bf16.msra.mxu0 %v1035
    %1434 = vmatmul.bf16.gmra.mxu0 %v78
    %v1435 = vpop.f32.mrf.mxu0
    %v1436 = vadd.f32 %v1423, %v1435
    %v1437 = vpop.f32.mrf.mxu0
    %1438 = vdwg.mxu0
    %1439 = vmatpush.bf16.msra.mxu0 0
    %1440 = vmatpush.bf16.msra.mxu0 0
    %1441 = vmatpush.bf16.msra.mxu0 0
    %1442 = vmatpush.bf16.msra.mxu0 0
    %1443 = vmatpush.bf16.msra.mxu0 0
    %1444 = vmatpush.bf16.msra.mxu0 0
    %1445 = vmatpush.bf16.msra.mxu0 0
    %1446 = vmatpush.bf16.msra.mxu0 %v1067
    %1447 = vmatmul.bf16.gmra.mxu0 %v1268
    %v1448 = vpop.f32.mrf.mxu0
    %v1449 = vadd.f32 %v1436, %v1448
    %v1450 = vpop.f32.mrf.mxu0
    %1451 = vdwg.mxu0
    %1452 = vmatpush.bf16.msra.mxu0 %v904
    %1453 = vmatpush.bf16.msra.mxu0 %v900
    %1454 = vmatpush.bf16.msra.mxu0 %v896
    %1455 = vmatpush.bf16.msra.mxu0 %v892
    %1456 = vmatpush.bf16.msra.mxu0 %v888
    %1457 = vmatpush.bf16.msra.mxu0 %v884
    %1458 = vmatpush.bf16.msra.mxu0 %v880
    %1459 = vmatpush.bf16.msra.mxu0 %v876
    %1460 = vmatmul.bf16.gmra.mxu0 %v73
    %v1461 = vpop.f32.mrf.mxu0
    %v1462 = vadd.f32 %v280, %v1461
    %v1463 = vpop.f32.mrf.mxu0
    %1464 = vdwg.mxu0
    %1465 = vmatpush.bf16.msra.mxu0 %v936
    %1466 = vmatpush.bf16.msra.mxu0 %v932
    %1467 = vmatpush.bf16.msra.mxu0 %v928
    %1468 = vmatpush.bf16.msra.mxu0 %v924
    %1469 = vmatpush.bf16.msra.mxu0 %v920
    %1470 = vmatpush.bf16.msra.mxu0 %v916
    %1471 = vmatpush.bf16.msra.mxu0 %v912
    %1472 = vmatpush.bf16.msra.mxu0 %v908
    %1473 = vmatmul.bf16.gmra.mxu0 %v74
    %v1474 = vpop.f32.mrf.mxu0
    %v1475 = vadd.f32 %v1462, %v1474
    %v1476 = vpop.f32.mrf.mxu0
    %1477 = vdwg.mxu0
    %1478 = vmatpush.bf16.msra.mxu0 %v968
    %1479 = vmatpush.bf16.msra.mxu0 %v964
    %1480 = vmatpush.bf16.msra.mxu0 %v960
    %1481 = vmatpush.bf16.msra.mxu0 %v956
    %1482 = vmatpush.bf16.msra.mxu0 %v952
    %1483 = vmatpush.bf16.msra.mxu0 %v948
    %1484 = vmatpush.bf16.msra.mxu0 %v944
    %1485 = vmatpush.bf16.msra.mxu0 %v940
    %1486 = vmatmul.bf16.gmra.mxu0 %v75
    %v1487 = vpop.f32.mrf.mxu0
    %v1488 = vadd.f32 %v1475, %v1487
    %v1489 = vpop.f32.mrf.mxu0
    %1490 = vdwg.mxu0
    %1491 = vmatpush.bf16.msra.mxu0 %v1000
    %1492 = vmatpush.bf16.msra.mxu0 %v996
    %1493 = vmatpush.bf16.msra.mxu0 %v992
    %1494 = vmatpush.bf16.msra.mxu0 %v988
    %1495 = vmatpush.bf16.msra.mxu0 %v984
    %1496 = vmatpush.bf16.msra.mxu0 %v980
    %1497 = vmatpush.bf16.msra.mxu0 %v976
    %1498 = vmatpush.bf16.msra.mxu0 %v972
    %1499 = vmatmul.bf16.gmra.mxu0 %v76
    %v1500 = vpop.f32.mrf.mxu0
    %v1501 = vadd.f32 %v1488, %v1500
    %v1502 = vpop.f32.mrf.mxu0
    %1503 = vdwg.mxu0
    %1504 = vmatpush.bf16.msra.mxu0 %v1032
    %1505 = vmatpush.bf16.msra.mxu0 %v1028
    %1506 = vmatpush.bf16.msra.mxu0 %v1024
    %1507 = vmatpush.bf16.msra.mxu0 %v1020
    %1508 = vmatpush.bf16.msra.mxu0 %v1016
    %1509 = vmatpush.bf16.msra.mxu0 %v1012
    %1510 = vmatpush.bf16.msra.mxu0 %v1008
    %1511 = vmatpush.bf16.msra.mxu0 %v1004
    %1512 = vmatmul.bf16.gmra.mxu0 %v77
    %v1513 = vpop.f32.mrf.mxu0
    %v1514 = vadd.f32 %v1501, %v1513
    %v1515 = vpop.f32.mrf.mxu0
    %1516 = vdwg.mxu0
    %1517 = vmatpush.bf16.msra.mxu0 %v1064
    %1518 = vmatpush.bf16.msra.mxu0 %v1060
    %1519 = vmatpush.bf16.msra.mxu0 %v1056
    %1520 = vmatpush.bf16.msra.mxu0 %v1052
    %1521 = vmatpush.bf16.msra.mxu0 %v1048
    %1522 = vmatpush.bf16.msra.mxu0 %v1044
    %1523 = vmatpush.bf16.msra.mxu0 %v1040
    %1524 = vmatpush.bf16.msra.mxu0 %v1036
    %1525 = vmatmul.bf16.gmra.mxu0 %v78
    %v1526 = vpop.f32.mrf.mxu0
    %v1527 = vadd.f32 %v1514, %v1526
    %v1528 = vpop.f32.mrf.mxu0
    %1529 = vdwg.mxu0
    %1530 = vmatpush.bf16.msra.mxu0 0
    %1531 = vmatpush.bf16.msra.mxu0 0
    %1532 = vmatpush.bf16.msra.mxu0 0
    %1533 = vmatpush.bf16.msra.mxu0 0
    %1534 = vmatpush.bf16.msra.mxu0 0
    %1535 = vmatpush.bf16.msra.mxu0 0
    %1536 = vmatpush.bf16.msra.mxu0 0
    %1537 = vmatpush.bf16.msra.mxu0 %v1068
    %1538 = vmatmul.bf16.gmra.mxu0 %v1268
    %v1539 = vpop.f32.mrf.mxu0
    %v1540 = vadd.f32 %v1527, %v1539
    %v1541 = vpop.f32.mrf.mxu0
    %1542 = vdwg.mxu0
    %1543 = vmatpush.bf16.msra.mxu0 %v905
    %1544 = vmatpush.bf16.msra.mxu0 %v901
    %1545 = vmatpush.bf16.msra.mxu0 %v897
    %1546 = vmatpush.bf16.msra.mxu0 %v893
    %1547 = vmatpush.bf16.msra.mxu0 %v889
    %1548 = vmatpush.bf16.msra.mxu0 %v885
    %1549 = vmatpush.bf16.msra.mxu0 %v881
    %1550 = vmatpush.bf16.msra.mxu0 %v877
    %1551 = vmatmul.bf16.gmra.mxu0 %v73
    %v1552 = vpop.f32.mrf.mxu0
    %v1553 = vadd.f32 %v281, %v1552
    %v1554 = vpop.f32.mrf.mxu0
    %1555 = vdwg.mxu0
    %1556 = vmatpush.bf16.msra.mxu0 %v937
    %1557 = vmatpush.bf16.msra.mxu0 %v933
    %1558 = vmatpush.bf16.msra.mxu0 %v929
    %1559 = vmatpush.bf16.msra.mxu0 %v925
    %1560 = vmatpush.bf16.msra.mxu0 %v921
    %1561 = vmatpush.bf16.msra.mxu0 %v917
    %1562 = vmatpush.bf16.msra.mxu0 %v913
    %1563 = vmatpush.bf16.msra.mxu0 %v909
    %1564 = vmatmul.bf16.gmra.mxu0 %v74
    %v1565 = vpop.f32.mrf.mxu0
    %v1566 = vadd.f32 %v1553, %v1565
    %v1567 = vpop.f32.mrf.mxu0
    %1568 = vdwg.mxu0
    %1569 = vmatpush.bf16.msra.mxu0 %v969
    %1570 = vmatpush.bf16.msra.mxu0 %v965
    %1571 = vmatpush.bf16.msra.mxu0 %v961
    %1572 = vmatpush.bf16.msra.mxu0 %v957
    %1573 = vmatpush.bf16.msra.mxu0 %v953
    %1574 = vmatpush.bf16.msra.mxu0 %v949
    %1575 = vmatpush.bf16.msra.mxu0 %v945
    %1576 = vmatpush.bf16.msra.mxu0 %v941
    %1577 = vmatmul.bf16.gmra.mxu0 %v75
    %v1578 = vpop.f32.mrf.mxu0
    %v1579 = vadd.f32 %v1566, %v1578
    %v1580 = vpop.f32.mrf.mxu0
    %1581 = vdwg.mxu0
    %1582 = vmatpush.bf16.msra.mxu0 %v1001
    %1583 = vmatpush.bf16.msra.mxu0 %v997
    %1584 = vmatpush.bf16.msra.mxu0 %v993
    %1585 = vmatpush.bf16.msra.mxu0 %v989
    %1586 = vmatpush.bf16.msra.mxu0 %v985
    %1587 = vmatpush.bf16.msra.mxu0 %v981
    %1588 = vmatpush.bf16.msra.mxu0 %v977
    %1589 = vmatpush.bf16.msra.mxu0 %v973
    %1590 = vmatmul.bf16.gmra.mxu0 %v76
    %v1591 = vpop.f32.mrf.mxu0
    %v1592 = vadd.f32 %v1579, %v1591
    %v1593 = vpop.f32.mrf.mxu0
    %1594 = vdwg.mxu0
    %1595 = vmatpush.bf16.msra.mxu0 %v1033
    %1596 = vmatpush.bf16.msra.mxu0 %v1029
    %1597 = vmatpush.bf16.msra.mxu0 %v1025
    %1598 = vmatpush.bf16.msra.mxu0 %v1021
    %1599 = vmatpush.bf16.msra.mxu0 %v1017
    %1600 = vmatpush.bf16.msra.mxu0 %v1013
    %1601 = vmatpush.bf16.msra.mxu0 %v1009
    %1602 = vmatpush.bf16.msra.mxu0 %v1005
    %1603 = vmatmul.bf16.gmra.mxu0 %v77
    %v1604 = vpop.f32.mrf.mxu0
    %v1605 = vadd.f32 %v1592, %v1604
    %v1606 = vpop.f32.mrf.mxu0
    %1607 = vdwg.mxu0
    %1608 = vmatpush.bf16.msra.mxu0 %v1065
    %1609 = vmatpush.bf16.msra.mxu0 %v1061
    %1610 = vmatpush.bf16.msra.mxu0 %v1057
    %1611 = vmatpush.bf16.msra.mxu0 %v1053
    %1612 = vmatpush.bf16.msra.mxu0 %v1049
    %1613 = vmatpush.bf16.msra.mxu0 %v1045
    %1614 = vmatpush.bf16.msra.mxu0 %v1041
    %1615 = vmatpush.bf16.msra.mxu0 %v1037
    %1616 = vmatmul.bf16.gmra.mxu0 %v78
    %v1617 = vpop.f32.mrf.mxu0
    %v1618 = vadd.f32 %v1605, %v1617
    %v1619 = vpop.f32.mrf.mxu0
    %1620 = vdwg.mxu0
    %1621 = vmatpush.bf16.msra.mxu0 0
    %1622 = vmatpush.bf16.msra.mxu0 0
    %1623 = vmatpush.bf16.msra.mxu0 0
    %1624 = vmatpush.bf16.msra.mxu0 0
    %1625 = vmatpush.bf16.msra.mxu0 0
    %1626 = vmatpush.bf16.msra.mxu0 0
    %1627 = vmatpush.bf16.msra.mxu0 0
    %1628 = vmatpush.bf16.msra.mxu0 %v1069
    %1629 = vmatmul.bf16.gmra.mxu0 %v1268
    %v1630 = vpop.f32.mrf.mxu0
    %v1631 = vadd.f32 %v1618, %v1630
    %v1632 = vpop.f32.mrf.mxu0
    %1633 = vdwg.mxu0
    %vm1634 = vcmp.gt.f32.partialorder %v1358, 0.0
    %vm1635 = vcmp.gt.f32.partialorder %v1449, 0.0
    %vm1636 = vcmp.gt.f32.partialorder %v1540, 0.0
    %vm1637 = vcmp.gt.f32.partialorder %v1631, 0.0
    %v1638 = vmul.f32 %v1358, 0.2
    %v1639 = vmul.f32 %v1449, 0.2
    %v1640 = vmul.f32 %v1540, 0.2
    %v1641 = vmul.f32 %v1631, 0.2
    %v1642 = vsel %vm1634, %v1358, %v1638
    %v1643 = vsel %vm1635, %v1449, %v1639
    %v1644 = vsel %vm1636, %v1540, %v1640
    %v1645 = vsel %vm1637, %v1631, %v1641
    %v1646 = vpack.c.bf16 %v1642, %v1642
    %v1647 = vpack.c.bf16 %v1643, %v1643
    %v1648 = vpack.c.bf16 %v1644, %v1644
    %v1649 = vpack.c.bf16 %v1645, %v1645
    %v1650 = vld [vmem:[%s3] sm:$0xff]
    %v1651 = vld [vmem:[%s3 + $0x8] sm:$0xff]
    %v1652 = vld [vmem:[%s3 + $0x10] sm:$0xff]
    %v1653 = vld [vmem:[%s3 + $0x18] sm:$0xff]
    %v1654 = vld [vmem:[%s3 + $0x20] sm:$0xff]
    %v1655 = vld [vmem:[%s3 + $0x28] sm:$0xff]
    %v1656 = vld [vmem:[%s3 + $0x30] sm:$0xff]
    %v1657 = vld [vmem:[%s3 + $0x38] sm:$0xff]
    %v1658 = vld [vmem:[%s3 + $0x40] sm:$0xff]
    %v1659 = vld [vmem:[%s3 + $0x48] sm:$0xff]
    %v1660 = vld [vmem:[%s3 + $0x50] sm:$0xff]
    %v1661 = vld [vmem:[%s3 + $0x58] sm:$0xff]
    %v1662 = vld [vmem:[%s3 + $0x60] sm:$0xff]
    %v1663 = vld [vmem:[%s3 + $0x68] sm:$0xff]
    %v1664 = vld [vmem:[%s3 + $0x70] sm:$0xff]
    %v1665 = vld [vmem:[%s3 + $0x78] sm:$0xff]
    %v1666 = vld [vmem:[%s3 + $0x80] sm:$0xff]
    %v1667 = vld [vmem:[%s3 + $0x88] sm:$0xff]
    %v1668 = vld [vmem:[%s3 + $0x90] sm:$0xff]
    %v1669 = vld [vmem:[%s3 + $0x98] sm:$0xff]
    %v1670 = vld [vmem:[%s3 + $0xa0] sm:$0xff]
    %v1671 = vld [vmem:[%s3 + $0xa8] sm:$0xff]
    %v1672 = vld [vmem:[%s3 + $0xb0] sm:$0xff]
    %v1673 = vld [vmem:[%s3 + $0xb8] sm:$0xff]
    %v1674 = vld [vmem:[%s3 + $0xc0] sm:$0xff]
    %v1675 = vld [vmem:[%s3 + $0xc8] sm:$0xff]
    %v1676 = vld [vmem:[%s3 + $0xd0] sm:$0xff]
    %v1677 = vld [vmem:[%s3 + $0xd8] sm:$0xff]
    %v1678 = vld [vmem:[%s3 + $0xe0] sm:$0xff]
    %v1679 = vld [vmem:[%s3 + $0xe8] sm:$0xff]
    %v1680 = vld [vmem:[%s3 + $0xf0] sm:$0xff]
    %v1681 = vld [vmem:[%s3 + $0xf8] sm:$0xff]
    %v1682 = vld [vmem:[%s3 + $0x100] sm:$0xff]
    %v1683 = vld [vmem:[%s3 + $0x108] sm:$0xff]
    %v1684 = vld [vmem:[%s3 + $0x110] sm:$0xff]
    %v1685 = vld [vmem:[%s3 + $0x118] sm:$0xff]
    %v1686 = vld [vmem:[%s3 + $0x120] sm:$0xff]
    %v1687 = vld [vmem:[%s3 + $0x128] sm:$0xff]
    %v1688 = vld [vmem:[%s3 + $0x130] sm:$0xff]
    %v1689 = vld [vmem:[%s3 + $0x138] sm:$0xff]
    %v1690 = vld [vmem:[%s3 + $0x140] sm:$0xff]
    %v1691 = vld [vmem:[%s3 + $0x148] sm:$0xff]
    %v1692 = vld [vmem:[%s3 + $0x150] sm:$0xff]
    %v1693 = vld [vmem:[%s3 + $0x158] sm:$0xff]
    %v1694 = vld [vmem:[%s3 + $0x160] sm:$0xff]
    %v1695 = vld [vmem:[%s3 + $0x168] sm:$0xff]
    %v1696 = vld [vmem:[%s3 + $0x170] sm:$0xff]
    %v1697 = vld [vmem:[%s3 + $0x178] sm:$0xff]
    %v1698 = vld [vmem:[%s3 + $0x180] sm:$0xff]
    %v1699 = vld [vmem:[%s3 + $0x188] sm:$0xff]
    %v1700 = vld [vmem:[%s3 + $0x190] sm:$0xff]
    %v1701 = vld [vmem:[%s3 + $0x198] sm:$0xff]
    %v1702 = vld [vmem:[%s3 + $0x1a0] sm:$0xff]
    %v1703 = vld [vmem:[%s3 + $0x1a8] sm:$0xff]
    %v1704 = vld [vmem:[%s3 + $0x1b0] sm:$0xff]
    %v1705 = vld [vmem:[%s3 + $0x1b8] sm:$0xff]
    %v1706 = vld [vmem:[%s3 + $0x1c0] sm:$0xff]
    %v1707 = vld [vmem:[%s3 + $0x1c8] sm:$0xff]
    %v1708 = vld [vmem:[%s3 + $0x1d0] sm:$0xff]
    %v1709 = vld [vmem:[%s3 + $0x1d8] sm:$0xff]
    %v1710 = vld [vmem:[%s3 + $0x1e0] sm:$0xff]
    %v1711 = vld [vmem:[%s3 + $0x1e8] sm:$0xff]
    %v1712 = vld [vmem:[%s3 + $0x1f0] sm:$0xff]
    %v1713 = vld [vmem:[%s3 + $0x1f8] sm:$0xff]
    %v1714 = vld [vmem:[%s4] sm:$0x3]
    %v1716 = vperm.slane %v1714, 0
    %v1717 = vperm.slane %v1714, 1
    %v1784 = vunpack.c.l.b16 %v1650
    %v1785 = vunpack.c.h.b16 %v1650
    %v1786 = vunpack.c.l.b16 %v1651
    %v1787 = vunpack.c.h.b16 %v1651
    %v1788 = vunpack.c.l.b16 %v1652
    %v1789 = vunpack.c.h.b16 %v1652
    %v1790 = vunpack.c.l.b16 %v1653
    %v1791 = vunpack.c.h.b16 %v1653
    %v1792 = vunpack.c.l.b16 %v1654
    %v1793 = vunpack.c.h.b16 %v1654
    %v1794 = vunpack.c.l.b16 %v1655
    %v1795 = vunpack.c.h.b16 %v1655
    %v1796 = vunpack.c.l.b16 %v1656
    %v1797 = vunpack.c.h.b16 %v1656
    %v1798 = vunpack.c.l.b16 %v1657
    %v1799 = vunpack.c.h.b16 %v1657
    %v1800 = vunpack.c.l.b16 %v1658
    %v1801 = vunpack.c.h.b16 %v1658
    %v1802 = vunpack.c.l.b16 %v1659
    %v1803 = vunpack.c.h.b16 %v1659
    %v1804 = vunpack.c.l.b16 %v1660
    %v1805 = vunpack.c.h.b16 %v1660
    %v1806 = vunpack.c.l.b16 %v1661
    %v1807 = vunpack.c.h.b16 %v1661
    %v1808 = vunpack.c.l.b16 %v1662
    %v1809 = vunpack.c.h.b16 %v1662
    %v1810 = vunpack.c.l.b16 %v1663
    %v1811 = vunpack.c.h.b16 %v1663
    %v1812 = vunpack.c.l.b16 %v1664
    %v1813 = vunpack.c.h.b16 %v1664
    %v1814 = vunpack.c.l.b16 %v1665
    %v1815 = vunpack.c.h.b16 %v1665
    %v1816 = vunpack.c.l.b16 %v1666
    %v1817 = vunpack.c.h.b16 %v1666
    %v1818 = vunpack.c.l.b16 %v1667
    %v1819 = vunpack.c.h.b16 %v1667
    %v1820 = vunpack.c.l.b16 %v1668
    %v1821 = vunpack.c.h.b16 %v1668
    %v1822 = vunpack.c.l.b16 %v1669
    %v1823 = vunpack.c.h.b16 %v1669
    %v1824 = vunpack.c.l.b16 %v1670
    %v1825 = vunpack.c.h.b16 %v1670
    %v1826 = vunpack.c.l.b16 %v1671
    %v1827 = vunpack.c.h.b16 %v1671
    %v1828 = vunpack.c.l.b16 %v1672
    %v1829 = vunpack.c.h.b16 %v1672
    %v1830 = vunpack.c.l.b16 %v1673
    %v1831 = vunpack.c.h.b16 %v1673
    %v1832 = vunpack.c.l.b16 %v1674
    %v1833 = vunpack.c.h.b16 %v1674
    %v1834 = vunpack.c.l.b16 %v1675
    %v1835 = vunpack.c.h.b16 %v1675
    %v1836 = vunpack.c.l.b16 %v1676
    %v1837 = vunpack.c.h.b16 %v1676
    %v1838 = vunpack.c.l.b16 %v1677
    %v1839 = vunpack.c.h.b16 %v1677
    %v1840 = vunpack.c.l.b16 %v1678
    %v1841 = vunpack.c.h.b16 %v1678
    %v1842 = vunpack.c.l.b16 %v1679
    %v1843 = vunpack.c.h.b16 %v1679
    %v1844 = vunpack.c.l.b16 %v1680
    %v1845 = vunpack.c.h.b16 %v1680
    %v1846 = vunpack.c.l.b16 %v1681
    %v1847 = vunpack.c.h.b16 %v1681
    %v1848 = vunpack.c.l.b16 %v1682
    %v1849 = vunpack.c.h.b16 %v1682
    %v1850 = vunpack.c.l.b16 %v1683
    %v1851 = vunpack.c.h.b16 %v1683
    %v1852 = vunpack.c.l.b16 %v1684
    %v1853 = vunpack.c.h.b16 %v1684
    %v1854 = vunpack.c.l.b16 %v1685
    %v1855 = vunpack.c.h.b16 %v1685
    %v1856 = vunpack.c.l.b16 %v1686
    %v1857 = vunpack.c.h.b16 %v1686
    %v1858 = vunpack.c.l.b16 %v1687
    %v1859 = vunpack.c.h.b16 %v1687
    %v1860 = vunpack.c.l.b16 %v1688
    %v1861 = vunpack.c.h.b16 %v1688
    %v1862 = vunpack.c.l.b16 %v1689
    %v1863 = vunpack.c.h.b16 %v1689
    %v1864 = vunpack.c.l.b16 %v1690
    %v1865 = vunpack.c.h.b16 %v1690
    %v1866 = vunpack.c.l.b16 %v1691
    %v1867 = vunpack.c.h.b16 %v1691
    %v1868 = vunpack.c.l.b16 %v1692
    %v1869 = vunpack.c.h.b16 %v1692
    %v1870 = vunpack.c.l.b16 %v1693
    %v1871 = vunpack.c.h.b16 %v1693
    %v1872 = vunpack.c.l.b16 %v1694
    %v1873 = vunpack.c.h.b16 %v1694
    %v1874 = vunpack.c.l.b16 %v1695
    %v1875 = vunpack.c.h.b16 %v1695
    %v1876 = vunpack.c.l.b16 %v1696
    %v1877 = vunpack.c.h.b16 %v1696
    %v1878 = vunpack.c.l.b16 %v1697
    %v1879 = vunpack.c.h.b16 %v1697
    %v1880 = vunpack.c.l.b16 %v1698
    %v1881 = vunpack.c.h.b16 %v1698
    %v1882 = vunpack.c.l.b16 %v1699
    %v1883 = vunpack.c.h.b16 %v1699
    %v1884 = vunpack.c.l.b16 %v1700
    %v1885 = vunpack.c.h.b16 %v1700
    %v1886 = vunpack.c.l.b16 %v1701
    %v1887 = vunpack.c.h.b16 %v1701
    %v1888 = vunpack.c.l.b16 %v1702
    %v1889 = vunpack.c.h.b16 %v1702
    %v1890 = vunpack.c.l.b16 %v1703
    %v1891 = vunpack.c.h.b16 %v1703
    %v1892 = vunpack.c.l.b16 %v1704
    %v1893 = vunpack.c.h.b16 %v1704
    %v1894 = vunpack.c.l.b16 %v1705
    %v1895 = vunpack.c.h.b16 %v1705
    %v1896 = vunpack.c.l.b16 %v1706
    %v1897 = vunpack.c.h.b16 %v1706
    %v1898 = vunpack.c.l.b16 %v1707
    %v1899 = vunpack.c.h.b16 %v1707
    %v1900 = vunpack.c.l.b16 %v1708
    %v1901 = vunpack.c.h.b16 %v1708
    %v1902 = vunpack.c.l.b16 %v1709
    %v1903 = vunpack.c.h.b16 %v1709
    %v1904 = vunpack.c.l.b16 %v1710
    %v1905 = vunpack.c.h.b16 %v1710
    %v1906 = vunpack.c.l.b16 %v1711
    %v1907 = vunpack.c.h.b16 %v1711
    %v1908 = vunpack.c.l.b16 %v1712
    %v1909 = vunpack.c.h.b16 %v1712
    %v1910 = vunpack.c.l.b16 %v1713
    %v1911 = vunpack.c.h.b16 %v1713
    %v1912 = vpack.c.b16 %v1786, %v1784
    %v1913 = vpack.c.b16 %v1787, %v1785
    %v1914 = vpack.c.b16 %v1790, %v1788
    %v1915 = vpack.c.b16 %v1791, %v1789
    %v1916 = vpack.c.b16 %v1794, %v1792
    %v1917 = vpack.c.b16 %v1795, %v1793
    %v1918 = vpack.c.b16 %v1798, %v1796
    %v1919 = vpack.c.b16 %v1799, %v1797
    %v1920 = vpack.c.b16 %v1802, %v1800
    %v1921 = vpack.c.b16 %v1803, %v1801
    %v1922 = vpack.c.b16 %v1806, %v1804
    %v1923 = vpack.c.b16 %v1807, %v1805
    %v1924 = vpack.c.b16 %v1810, %v1808
    %v1925 = vpack.c.b16 %v1811, %v1809
    %v1926 = vpack.c.b16 %v1814, %v1812
    %v1927 = vpack.c.b16 %v1815, %v1813
    %v1928 = vpack.c.b16 %v1818, %v1816
    %v1929 = vpack.c.b16 %v1819, %v1817
    %v1930 = vpack.c.b16 %v1822, %v1820
    %v1931 = vpack.c.b16 %v1823, %v1821
    %v1932 = vpack.c.b16 %v1826, %v1824
    %v1933 = vpack.c.b16 %v1827, %v1825
    %v1934 = vpack.c.b16 %v1830, %v1828
    %v1935 = vpack.c.b16 %v1831, %v1829
    %v1936 = vpack.c.b16 %v1834, %v1832
    %v1937 = vpack.c.b16 %v1835, %v1833
    %v1938 = vpack.c.b16 %v1838, %v1836
    %v1939 = vpack.c.b16 %v1839, %v1837
    %v1940 = vpack.c.b16 %v1842, %v1840
    %v1941 = vpack.c.b16 %v1843, %v1841
    %v1942 = vpack.c.b16 %v1846, %v1844
    %v1943 = vpack.c.b16 %v1847, %v1845
    %v1944 = vpack.c.b16 %v1850, %v1848
    %v1945 = vpack.c.b16 %v1851, %v1849
    %v1946 = vpack.c.b16 %v1854, %v1852
    %v1947 = vpack.c.b16 %v1855, %v1853
    %v1948 = vpack.c.b16 %v1858, %v1856
    %v1949 = vpack.c.b16 %v1859, %v1857
    %v1950 = vpack.c.b16 %v1862, %v1860
    %v1951 = vpack.c.b16 %v1863, %v1861
    %v1952 = vpack.c.b16 %v1866, %v1864
    %v1953 = vpack.c.b16 %v1867, %v1865
    %v1954 = vpack.c.b16 %v1870, %v1868
    %v1955 = vpack.c.b16 %v1871, %v1869
    %v1956 = vpack.c.b16 %v1874, %v1872
    %v1957 = vpack.c.b16 %v1875, %v1873
    %v1958 = vpack.c.b16 %v1878, %v1876
    %v1959 = vpack.c.b16 %v1879, %v1877
    %v1960 = vpack.c.b16 %v1882, %v1880
    %v1961 = vpack.c.b16 %v1883, %v1881
    %v1962 = vpack.c.b16 %v1886, %v1884
    %v1963 = vpack.c.b16 %v1887, %v1885
    %v1964 = vpack.c.b16 %v1890, %v1888
    %v1965 = vpack.c.b16 %v1891, %v1889
    %v1966 = vpack.c.b16 %v1894, %v1892
    %v1967 = vpack.c.b16 %v1895, %v1893
    %v1968 = vpack.c.b16 %v1898, %v1896
    %v1969 = vpack.c.b16 %v1899, %v1897
    %v1970 = vpack.c.b16 %v1902, %v1900
    %v1971 = vpack.c.b16 %v1903, %v1901
    %v1972 = vpack.c.b16 %v1906, %v1904
    %v1973 = vpack.c.b16 %v1907, %v1905
    %v1974 = vpack.c.b16 %v1910, %v1908
    %v1975 = vpack.c.b16 %v1911, %v1909
    %2040 = vmatpush.bf16.msra.mxu0 %v1926
    %2041 = vmatpush.bf16.msra.mxu0 %v1924
    %2042 = vmatpush.bf16.msra.mxu0 %v1922
    %2043 = vmatpush.bf16.msra.mxu0 %v1920
    %2044 = vmatpush.bf16.msra.mxu0 %v1918
    %2045 = vmatpush.bf16.msra.mxu0 %v1916
    %2046 = vmatpush.bf16.msra.mxu0 %v1914
    %2047 = vmatpush.bf16.msra.mxu0 %v1912
    %2048 = vmatmul.bf16.gmra.mxu0 %v1646
    %v2049 = vpop.f32.mrf.mxu0
    %v2050 = vadd.f32 %v1716, %v2049
    %v2051 = vpop.f32.mrf.mxu0
    %2052 = vdwg.mxu0
    %2053 = vmatpush.bf16.msra.mxu0 %v1942
    %2054 = vmatpush.bf16.msra.mxu0 %v1940
    %2055 = vmatpush.bf16.msra.mxu0 %v1938
    %2056 = vmatpush.bf16.msra.mxu0 %v1936
    %2057 = vmatpush.bf16.msra.mxu0 %v1934
    %2058 = vmatpush.bf16.msra.mxu0 %v1932
    %2059 = vmatpush.bf16.msra.mxu0 %v1930
    %2060 = vmatpush.bf16.msra.mxu0 %v1928
    %2061 = vmatmul.bf16.gmra.mxu0 %v1647
    %v2062 = vpop.f32.mrf.mxu0
    %v2063 = vadd.f32 %v2050, %v2062
    %v2064 = vpop.f32.mrf.mxu0
    %2065 = vdwg.mxu0
    %2066 = vmatpush.bf16.msra.mxu0 %v1958
    %2067 = vmatpush.bf16.msra.mxu0 %v1956
    %2068 = vmatpush.bf16.msra.mxu0 %v1954
    %2069 = vmatpush.bf16.msra.mxu0 %v1952
    %2070 = vmatpush.bf16.msra.mxu0 %v1950
    %2071 = vmatpush.bf16.msra.mxu0 %v1948
    %2072 = vmatpush.bf16.msra.mxu0 %v1946
    %2073 = vmatpush.bf16.msra.mxu0 %v1944
    %2074 = vmatmul.bf16.gmra.mxu0 %v1648
    %v2075 = vpop.f32.mrf.mxu0
    %v2076 = vadd.f32 %v2063, %v2075
    %v2077 = vpop.f32.mrf.mxu0
    %2078 = vdwg.mxu0
    %2079 = vmatpush.bf16.msra.mxu0 %v1974
    %2080 = vmatpush.bf16.msra.mxu0 %v1972
    %2081 = vmatpush.bf16.msra.mxu0 %v1970
    %2082 = vmatpush.bf16.msra.mxu0 %v1968
    %2083 = vmatpush.bf16.msra.mxu0 %v1966
    %2084 = vmatpush.bf16.msra.mxu0 %v1964
    %2085 = vmatpush.bf16.msra.mxu0 %v1962
    %2086 = vmatpush.bf16.msra.mxu0 %v1960
    %2087 = vmatmul.bf16.gmra.mxu0 %v1649
    %v2088 = vpop.f32.mrf.mxu0
    %v2089 = vadd.f32 %v2076, %v2088
    %v2090 = vpop.f32.mrf.mxu0
    %2091 = vdwg.mxu0
    %2092 = vmatpush.bf16.msra.mxu0 %v1927
    %2093 = vmatpush.bf16.msra.mxu0 %v1925
    %2094 = vmatpush.bf16.msra.mxu0 %v1923
    %2095 = vmatpush.bf16.msra.mxu0 %v1921
    %2096 = vmatpush.bf16.msra.mxu0 %v1919
    %2097 = vmatpush.bf16.msra.mxu0 %v1917
    %2098 = vmatpush.bf16.msra.mxu0 %v1915
    %2099 = vmatpush.bf16.msra.mxu0 %v1913
    %2100 = vmatmul.bf16.gmra.mxu0 %v1646
    %v2101 = vpop.f32.mrf.mxu0
    %v2102 = vadd.f32 %v1717, %v2101
    %v2103 = vpop.f32.mrf.mxu0
    %2104 = vdwg.mxu0
    %2105 = vmatpush.bf16.msra.mxu0 %v1943
    %2106 = vmatpush.bf16.msra.mxu0 %v1941
    %2107 = vmatpush.bf16.msra.mxu0 %v1939
    %2108 = vmatpush.bf16.msra.mxu0 %v1937
    %2109 = vmatpush.bf16.msra.mxu0 %v1935
    %2110 = vmatpush.bf16.msra.mxu0 %v1933
    %2111 = vmatpush.bf16.msra.mxu0 %v1931
    %2112 = vmatpush.bf16.msra.mxu0 %v1929
    %2113 = vmatmul.bf16.gmra.mxu0 %v1647
    %v2114 = vpop.f32.mrf.mxu0
    %v2115 = vadd.f32 %v2102, %v2114
    %v2116 = vpop.f32.mrf.mxu0
    %2117 = vdwg.mxu0
    %2118 = vmatpush.bf16.msra.mxu0 %v1959
    %2119 = vmatpush.bf16.msra.mxu0 %v1957
    %2120 = vmatpush.bf16.msra.mxu0 %v1955
    %2121 = vmatpush.bf16.msra.mxu0 %v1953
    %2122 = vmatpush.bf16.msra.mxu0 %v1951
    %2123 = vmatpush.bf16.msra.mxu0 %v1949
    %2124 = vmatpush.bf16.msra.mxu0 %v1947
    %2125 = vmatpush.bf16.msra.mxu0 %v1945
    %2126 = vmatmul.bf16.gmra.mxu0 %v1648
    %v2127 = vpop.f32.mrf.mxu0
    %v2128 = vadd.f32 %v2115, %v2127
    %v2129 = vpop.f32.mrf.mxu0
    %2130 = vdwg.mxu0
    %2131 = vmatpush.bf16.msra.mxu0 %v1975
    %2132 = vmatpush.bf16.msra.mxu0 %v1973
    %2133 = vmatpush.bf16.msra.mxu0 %v1971
    %2134 = vmatpush.bf16.msra.mxu0 %v1969
    %2135 = vmatpush.bf16.msra.mxu0 %v1967
    %2136 = vmatpush.bf16.msra.mxu0 %v1965
    %2137 = vmatpush.bf16.msra.mxu0 %v1963
    %2138 = vmatpush.bf16.msra.mxu0 %v1961
    %2139 = vmatmul.bf16.gmra.mxu0 %v1649
    %v2140 = vpop.f32.mrf.mxu0
    %v2141 = vadd.f32 %v2128, %v2140
    %v2142 = vpop.f32.mrf.mxu0
    %2143 = vdwg.mxu0
    %vm2144 = vcmp.gt.f32.partialorder %v2089, 0.0
    %vm2145 = vcmp.gt.f32.partialorder %v2141, 0.0
    %v2146 = vmul.f32 %v2089, 0.2
    %v2147 = vmul.f32 %v2141, 0.2
    %v2148 = vsel %vm2144, %v2089, %v2146
    %v2149 = vsel %vm2145, %v2141, %v2147
    %v2150 = vld [vmem:[%s5] sm:$0x3]
    %v2152 = vperm.slane %v2150, 0
    %v2153 = vperm.slane %v2150, 1
    %v2156 = vmul.f32 %v2148, %v2152
    %v2157 = vmul.f32 %v2149, %v2153
    %v2158 = vadd.f32 %v2156, %v2157
    %2159 = vadd.xlane.f32.xlu0 %v2158
    %v2160 = vpop.xlane.xlu0 %2159
    %s2161 = sld [smem:[#allocation2]]
    %v2162 = vstv %s2161
    %v2163 = vadd.f32 %v2160, %v2162
    %vm2164 = vcmask 7168
    %2165 = vst.msk [vmem:[#allocation3] sm:$0xff] %vm2164, %v2163
    // Predicated region
    $region30: #{discriminator_forward.1} parent=1 // pred_check
      _
    $region31: #{discriminator_forward.1} parent=1 // pred_check_branch
      %2167 = sbr.rel (0) target = $region33
    $region32: #{discriminator_forward.1} parent=1 // pred_region
      // Predicated region
      $region34: #{discriminator_forward.1} parent=32 // pred_check
        _
      $region35: #{discriminator_forward.1} parent=32 // pred_check_branch
        %2169 = sbr.rel (0) target = $region37
      $region36: #{discriminator_forward.1} parent=32 // pred_region
        // Predicated region
        $region38: #{discriminator_forward.1} parent=36 // pred_check
          _
        $region39: #{discriminator_forward.1} parent=36 // pred_check_branch
          %2171 = sbr.rel target = $region41
        $region40: #{discriminator_forward.1} parent=36 // pred_region
          // Predicated region
          $region53: #{discriminator_forward.1} parent=40 // pred_check
            _
          $region54: #{discriminator_forward.1} parent=40 // pred_check_branch
            %2187 = sbr.rel (0) target = $region56
          $region55: #{discriminator_forward.1} parent=40 // pred_region
            %s2189 = ssub.s32 4, 1
            loop: start=0, step=1, limit=1
            $region57: #{discriminator_forward.1} parent=55 // loop_pre_header
              _
            $region58: #{discriminator_forward.1} parent=55 // loop_header
              %s2191 = sphi 0, %s2195
              %p2192 = scmp.ge.s32.totalorder %s2191, 1
              %s2196 = sphi [#allocation3], [#allocation3]
              %s2197 = sphi %s7, %s7
            $region59: #{discriminator_forward.1} parent=55 // loop_header_branch
              %2194 = sbr.rel (%p2192) target = $region63
            $region60: #{discriminator_forward.1} parent=55 // loop_body
              %v2198 = vld [vmem:[%s2196] sm:%s2189]
              %2199 = vst [vmem:[%s2197] sm:%s2189] %v2198
            $region61: #{discriminator_forward.1} parent=55 // loop_footer
              %s2195 = sadd.s32 1, %s2191
            $region62: #{discriminator_forward.1} parent=55 // loop_footer_branch
              %2190 = sbr.rel target = $region58
            $region63: #{discriminator_forward.1} parent=55 // loop_exit
              _
          $region56: #{discriminator_forward.1} parent=40 // pred_fallthru
            _
        $region41: #{discriminator_forward.1} parent=36 // pred_fallthru
          _
        // Predicated region
        $region42: #{discriminator_forward.1} parent=36 // pred_check
          _
        $region43: #{discriminator_forward.1} parent=36 // pred_check_branch
          %2173 = sbr.rel (0) target = $region45
        $region44: #{discriminator_forward.1} parent=36 // pred_region
          %s2175 = ssub.s32 4, 1
          loop: start=0, step=1, limit=1
          $region46: #{discriminator_forward.1} parent=44 // loop_pre_header
            _
          $region47: #{discriminator_forward.1} parent=44 // loop_header
            %s2177 = sphi 0, %s2181
            %p2178 = scmp.ge.s32.totalorder %s2177, 1
            %s2182 = sphi [#allocation3], [#allocation3]
            %s2183 = sphi %s7, %s7
          $region48: #{discriminator_forward.1} parent=44 // loop_header_branch
            %2180 = sbr.rel (%p2178) target = $region52
          $region49: #{discriminator_forward.1} parent=44 // loop_body
            %v2184 = vld [vmem:[%s2182] sm:%s2175]
            %2185 = vst [vmem:[%s2183] sm:%s2175] %v2184
          $region50: #{discriminator_forward.1} parent=44 // loop_footer
            %s2181 = sadd.s32 1, %s2177
          $region51: #{discriminator_forward.1} parent=44 // loop_footer_branch
            %2176 = sbr.rel target = $region47
          $region52: #{discriminator_forward.1} parent=44 // loop_exit
            _
        $region45: #{discriminator_forward.1} parent=36 // pred_fallthru
          _
      $region37: #{discriminator_forward.1} parent=32 // pred_fallthru
        _
      %2200 = vnop
    $region33: #{discriminator_forward.1} parent=1 // pred_fallthru
      _
    // Predicated region
    $region64: #{discriminator_forward.1} parent=1 // pred_check
      _
    $region65: #{discriminator_forward.1} parent=1 // pred_check_branch
      %2202 = sbr.rel (0) target = $region67
    $region66: #{discriminator_forward.1} parent=1 // pred_region
      _
    $region67: #{discriminator_forward.1} parent=1 // pred_fallthru
      _

</llo_original>
